<compile_context>
chip_gen: v7x
topology: tpu7x:2x2x1
jax: 0.10.0
libtpu: 0.0.40
codegen_flags: <defaults>
</compile_context>

<pallas_src>
import jax
import jax.numpy as jnp
from jax.experimental import pallas as pl
from jax.experimental.pallas import tpu as pltpu


def attn_lstm_kernel(x_ref, wih_ref, whh_ref, b_ref, wl_ref, bl_ref, out_ref):
    """Full forward pass: LSTM recurrence -> attention -> linear head (padded lanes).

    x_ref is time-major: (S, B_tile, E).
    """
    S, B, E = x_ref.shape
    H = whh_ref.shape[0]
    G = 4 * H

    # ---- Hoisted input projection (off the serial path), time-major so that each
    # per-step slice is a leading-axis (whole-vreg) selection.
    x_flat = x_ref[...].reshape(S * B, E)
    xw = (
        jnp.dot(x_flat, wih_ref[...], preferred_element_type=jnp.float32)
        + b_ref[...]
    ).reshape(S, B, G)
    xw_steps = [xw[t] for t in range(S)]  # each (B, 4H): plain sublane-group slices

    whh = whh_ref[...]  # resident in vregs across the unrolled recurrence

    # ---- Constants for the single-tanh gate activation:
    #   sigmoid(x) = 0.5 * tanh(0.5 * x) + 0.5   (i, f, o lanes)
    #   tanh(x)    = tanh(x)                      (g lanes)
    col = jax.lax.broadcasted_iota(jnp.int32, (1, G), 1)
    is_g = (col >= 2 * H) & (col < 3 * H)
    pre_scale = jnp.where(is_g, 1.0, 0.5).astype(jnp.float32)   # before tanh
    post_scale = pre_scale                                      # after tanh
    post_off = jnp.where(is_g, 0.0, 0.5).astype(jnp.float32)

    c = jnp.zeros((B, H), jnp.float32)
    h = jnp.zeros((B, H), jnp.float32)
    hs = []

    # ---- Fully unrolled recurrence (S is static). Per step: 1 MXU push + VPU ops
    # + 2 EUP passes (tanh over the full gates vreg, tanh(c)).
    for t in range(S):
        if t == 0:
            gates = xw_steps[0]  # h0 == 0: skip the zero h @ W_hh matmul
        else:
            gates = xw_steps[t] + jnp.dot(
                h, whh, preferred_element_type=jnp.float32)
        act = jnp.tanh(gates * pre_scale) * post_scale + post_off
        i = act[:, 0:H]
        f = act[:, H:2 * H]
        g = act[:, 2 * H:3 * H]
        o = act[:, 3 * H:4 * H]
        if t == 0:
            c = i * g            # c0 == 0: skip f * c
        else:
            c = f * c + i * g
        h = o * jnp.tanh(c)
        hs.append(h)

    h_final = hs[-1]

    # ---- Attention over the vreg-resident hidden states (no VMEM round-trip).
    # scores_t = <h_t, h_final> per batch row, shape (B, 1).
    scores = [jnp.sum(ht * h_final, axis=1, keepdims=True) for ht in hs]
    m = scores[0]
    for s in scores[1:]:
        m = jnp.maximum(m, s)
    exps = [jnp.exp(s - m) for s in scores]
    denom = exps[0]
    for e in exps[1:]:
        denom = denom + e
    r = pl.reciprocal(denom, approx=True)
    r = r * (2.0 - denom * r)  # one Newton step -> full f32 accuracy, EUP-launched

    # Deferred normalization: accumulate unnormalized context, scale once at the end.
    ctx_u = exps[0] * hs[0]
    for ht, et in zip(hs[1:], exps[1:]):
        ctx_u = ctx_u + et * ht
    ctx = ctx_u * r

    # ---- Classifier head; lane-dense (B, 128) store, sliced to C in the wrapper.
    out_ref[...] = (
        jnp.dot(ctx, wl_ref[...], preferred_element_type=jnp.float32) + bl_ref[...]
    )


def attention_lstm_forward(x, wih_t, whh_t, bias, wl_t, bl):
    B, S, E = x.shape
    H = whh_t.shape[0]
    C = wl_t.shape[1]
    G = 4 * H

    # Pad batch to a sublane multiple so every (B, 4H)/(B, H) vreg is fully occupied.
    B_TILE = 8
    B_pad = ((B + B_TILE - 1) // B_TILE) * B_TILE
    x_p = jnp.zeros((B_pad, S, E), jnp.float32).at[:B].set(x)
    # Time-major layout for leading-axis per-step slicing in the kernel.
    x_tm = jnp.transpose(x_p, (1, 0, 2))  # (S, B_pad, E)

    # Pad the classifier to a lane-dense 128-multiple output; slice back outside.
    C_pad = max(128, ((C + 127) // 128) * 128)
    wl_pad = jnp.zeros((H, C_pad), jnp.float32).at[:, :C].set(wl_t)
    bl_pad = jnp.zeros((1, C_pad), jnp.float32).at[:, :C].set(bl)

    grid = (B_pad // B_TILE,)
    out = pl.pallas_call(
        attn_lstm_kernel,
        out_shape=jax.ShapeDtypeStruct((B_pad, C_pad), jnp.float32),
        grid_spec=pltpu.PrefetchScalarGridSpec(
            num_scalar_prefetch=0,
            grid=grid,
            in_specs=[
                pl.BlockSpec((S, B_TILE, E), lambda b: (0, b, 0)),
                pl.BlockSpec((E, G), lambda b: (0, 0)),
                pl.BlockSpec((H, G), lambda b: (0, 0)),
                pl.BlockSpec((1, G), lambda b: (0, 0)),
                pl.BlockSpec((H, C_pad), lambda b: (0, 0)),
                pl.BlockSpec((1, C_pad), lambda b: (0, 0)),
            ],
            out_specs=pl.BlockSpec((B_TILE, C_pad), lambda b: (b, 0)),
        ),
        compiler_params=pltpu.CompilerParams(
            dimension_semantics=("parallel",)),
    )(x_tm, wih_t, whh_t, bias, wl_pad, bl_pad)
    return out[:B, :C]


def reference_forward(x, wih_t, whh_t, bias, wl_t, bl):
    """Pure-JAX reference matching PyTorch LSTM/attention semantics."""
    B, S, E = x.shape
    H = whh_t.shape[0]

    def step(carry, x_t):
        h, c = carry
        g = x_t @ wih_t + h @ whh_t + bias
        i = jax.nn.sigmoid(g[:, :H])
        f = jax.nn.sigmoid(g[:, H:2 * H])
        gg = jnp.tanh(g[:, 2 * H:3 * H])
        o = jax.nn.sigmoid(g[:, 3 * H:])
        c = f * c + i * gg
        h = o * jnp.tanh(c)
        return (h, c), h

    (h_f, _), outs = jax.lax.scan(
        step, (jnp.zeros((B, H)), jnp.zeros((B, H))), jnp.swapaxes(x, 0, 1))
    lstm_out = jnp.swapaxes(outs, 0, 1)                            # (B, S, H)
    attn = jnp.einsum('bsh,bh->bs', lstm_out, h_f)
    probs = jax.nn.softmax(attn, axis=1)
    ctx = jnp.einsum('bsh,bs->bh', lstm_out, probs)
    return ctx @ wl_t + bl


if __name__ == "__main__":
    # Small shapes consistent with the module: batch=2, seq=8, emb=32, hidden=32, classes=4
    B, S, E, H, C = 2, 8, 32, 32, 4

    key = jax.random.PRNGKey(0)
    kx, k1, k2, k3, k4, k5, k6 = jax.random.split(key, 7)

    x = jax.random.normal(kx, (B, S, E), dtype=jnp.float32)

    k = 1.0 / jnp.sqrt(jnp.float32(H))  # PyTorch-style uniform(-1/sqrt(H), 1/sqrt(H))
    wih_t = jax.random.uniform(k1, (E, 4 * H), jnp.float32, -k, k)   # W_ih^T
    whh_t = jax.random.uniform(k2, (H, 4 * H), jnp.float32, -k, k)   # W_hh^T
    b_ih = jax.random.uniform(k3, (1, 4 * H), jnp.float32, -k, k)
    b_hh = jax.random.uniform(k4, (1, 4 * H), jnp.float32, -k, k)
    bias = b_ih + b_hh
    wl_t = jax.random.uniform(k5, (H, C), jnp.float32, -k, k)        # label.weight^T
    bl = jax.random.uniform(k6, (1, C), jnp.float32, -k, k)          # label.bias

    logits = attention_lstm_forward(x, wih_t, whh_t, bias, wl_t, bl)
    logits = jax.block_until_ready(logits)

    ref = reference_forward(x, wih_t, whh_t, bias, wl_t, bl)
    assert logits.shape == (B, C)
    assert jnp.max(jnp.abs(logits - ref)) < 1e-4, "Pallas kernel mismatch vs reference"

    print("KERNEL_OK")
</pallas_src>

<mosaic_0001>
module attributes {stable_mosaic.version = 11 : i64} {
  func.func @attn_lstm_kernel(%arg0: i32, %arg1: memref<8x8x32xf32, #tpu.memory_space<vmem>>, %arg2: memref<32x128xf32, #tpu.memory_space<vmem>>, %arg3: memref<32x128xf32, #tpu.memory_space<vmem>>, %arg4: memref<1x128xf32, #tpu.memory_space<vmem>>, %arg5: memref<32x128xf32, #tpu.memory_space<vmem>>, %arg6: memref<1x128xf32, #tpu.memory_space<vmem>>, %arg7: memref<8x128xf32, #tpu.memory_space<vmem>>) attributes {dimension_semantics = [#tpu.dimension_semantics<parallel>], iteration_bounds = array<i64: 1>, scalar_prefetch = 0 : i64, scratch_operands = 0 : i64, tpu.core_type = #tpu.core_type<tc>, window_params = [{transform_indices = @transform_0, window_bounds = array<i64: 8, 8, 32>}, {pipeline_mode = #tpu.pipeline_mode<synchronous>, transform_indices = @transform_1, window_bounds = array<i64: 32, 128>}, {pipeline_mode = #tpu.pipeline_mode<synchronous>, transform_indices = @transform_2, window_bounds = array<i64: 32, 128>}, {pipeline_mode = #tpu.pipeline_mode<synchronous>, transform_indices = @transform_3, window_bounds = array<i64: 1, 128>}, {pipeline_mode = #tpu.pipeline_mode<synchronous>, transform_indices = @transform_4, window_bounds = array<i64: 32, 128>}, {pipeline_mode = #tpu.pipeline_mode<synchronous>, transform_indices = @transform_5, window_bounds = array<i64: 1, 128>}, {transform_indices = @transform_6, window_bounds = array<i64: 8, 128>}]} {
    %c0 = arith.constant 0 : index
    %c0_0 = arith.constant 0 : index
    %c0_1 = arith.constant 0 : index
    %0 = vector.load %arg1[%c0, %c0_0, %c0_1] : memref<8x8x32xf32, #tpu.memory_space<vmem>>, vector<8x8x32xf32>
    %1 = vector.shape_cast %0 : vector<8x8x32xf32> to vector<64x32xf32>
    %c0_2 = arith.constant 0 : index
    %c0_3 = arith.constant 0 : index
    %2 = vector.load %arg2[%c0_2, %c0_3] : memref<32x128xf32, #tpu.memory_space<vmem>>, vector<32x128xf32>
    %cst = arith.constant dense<0.000000e+00> : vector<64x128xf32>
    %3 = tpu.matmul %1, %2, %cst {dimension_numbers = #tpu.dot_dimension_numbers<[1], [0], [0], [1], [0, 0, 1, 1], [], []>} : vector<64x32xf32>, vector<32x128xf32>, vector<64x128xf32> -> vector<64x128xf32>
    %c0_4 = arith.constant 0 : index
    %c0_5 = arith.constant 0 : index
    %4 = vector.load %arg4[%c0_4, %c0_5] : memref<1x128xf32, #tpu.memory_space<vmem>>, vector<1x128xf32>
    %5 = vector.broadcast %4 : vector<1x128xf32> to vector<64x128xf32>
    %6 = arith.addf %3, %5 : vector<64x128xf32>
    %7 = vector.shape_cast %6 : vector<64x128xf32> to vector<8x8x128xf32>
    %8 = vector.extract_strided_slice %7 {offsets = [0, 0, 0], sizes = [1, 8, 128], strides = [1, 1, 1]} : vector<8x8x128xf32> to vector<1x8x128xf32>
    %9 = vector.shape_cast %8 : vector<1x8x128xf32> to vector<8x128xf32>
    %10 = vector.extract_strided_slice %7 {offsets = [1, 0, 0], sizes = [1, 8, 128], strides = [1, 1, 1]} : vector<8x8x128xf32> to vector<1x8x128xf32>
    %11 = vector.shape_cast %10 : vector<1x8x128xf32> to vector<8x128xf32>
    %12 = vector.extract_strided_slice %7 {offsets = [2, 0, 0], sizes = [1, 8, 128], strides = [1, 1, 1]} : vector<8x8x128xf32> to vector<1x8x128xf32>
    %13 = vector.shape_cast %12 : vector<1x8x128xf32> to vector<8x128xf32>
    %14 = vector.extract_strided_slice %7 {offsets = [3, 0, 0], sizes = [1, 8, 128], strides = [1, 1, 1]} : vector<8x8x128xf32> to vector<1x8x128xf32>
    %15 = vector.shape_cast %14 : vector<1x8x128xf32> to vector<8x128xf32>
    %16 = vector.extract_strided_slice %7 {offsets = [4, 0, 0], sizes = [1, 8, 128], strides = [1, 1, 1]} : vector<8x8x128xf32> to vector<1x8x128xf32>
    %17 = vector.shape_cast %16 : vector<1x8x128xf32> to vector<8x128xf32>
    %18 = vector.extract_strided_slice %7 {offsets = [5, 0, 0], sizes = [1, 8, 128], strides = [1, 1, 1]} : vector<8x8x128xf32> to vector<1x8x128xf32>
    %19 = vector.shape_cast %18 : vector<1x8x128xf32> to vector<8x128xf32>
    %20 = vector.extract_strided_slice %7 {offsets = [6, 0, 0], sizes = [1, 8, 128], strides = [1, 1, 1]} : vector<8x8x128xf32> to vector<1x8x128xf32>
    %21 = vector.shape_cast %20 : vector<1x8x128xf32> to vector<8x128xf32>
    %22 = vector.extract_strided_slice %7 {offsets = [7, 0, 0], sizes = [1, 8, 128], strides = [1, 1, 1]} : vector<8x8x128xf32> to vector<1x8x128xf32>
    %23 = vector.shape_cast %22 : vector<1x8x128xf32> to vector<8x128xf32>
    %c0_6 = arith.constant 0 : index
    %c0_7 = arith.constant 0 : index
    %24 = vector.load %arg3[%c0_6, %c0_7] : memref<32x128xf32, #tpu.memory_space<vmem>>, vector<32x128xf32>
    %25 = tpu.iota {dimensions = array<i32: 1>} : vector<1x128xi32>
    %c64_i32 = arith.constant 64 : i32
    %26 = vector.broadcast %c64_i32 : i32 to vector<1x128xi32>
    %27 = arith.cmpi sge, %25, %26 : vector<1x128xi32>
    %c96_i32 = arith.constant 96 : i32
    %28 = vector.broadcast %c96_i32 : i32 to vector<1x128xi32>
    %29 = arith.cmpi slt, %25, %28 : vector<1x128xi32>
    %30 = arith.andi %27, %29 : vector<1x128xi1>
    %cst_8 = arith.constant 1.000000e+00 : f32
    %cst_9 = arith.constant 5.000000e-01 : f32
    %31 = vector.broadcast %cst_8 : f32 to vector<1x128xf32>
    %32 = vector.broadcast %cst_9 : f32 to vector<1x128xf32>
    %33 = arith.select %30, %31, %32 : vector<1x128xi1>, vector<1x128xf32>
    %cst_10 = arith.constant 0.000000e+00 : f32
    %cst_11 = arith.constant 5.000000e-01 : f32
    %34 = vector.broadcast %cst_10 : f32 to vector<1x128xf32>
    %35 = vector.broadcast %cst_11 : f32 to vector<1x128xf32>
    %36 = arith.select %30, %34, %35 : vector<1x128xi1>, vector<1x128xf32>
    %37 = vector.broadcast %33 : vector<1x128xf32> to vector<8x128xf32>
    %38 = arith.mulf %9, %37 : vector<8x128xf32>
    %39 = math.tanh %38 : vector<8x128xf32>
    %40 = vector.broadcast %33 : vector<1x128xf32> to vector<8x128xf32>
    %41 = arith.mulf %39, %40 : vector<8x128xf32>
    %42 = vector.broadcast %36 : vector<1x128xf32> to vector<8x128xf32>
    %43 = arith.addf %41, %42 : vector<8x128xf32>
    %44 = vector.extract_strided_slice %43 {offsets = [0, 0], sizes = [8, 32], strides = [1, 1]} : vector<8x128xf32> to vector<8x32xf32>
    %45 = vector.extract_strided_slice %43 {offsets = [0, 64], sizes = [8, 32], strides = [1, 1]} : vector<8x128xf32> to vector<8x32xf32>
    %46 = vector.extract_strided_slice %43 {offsets = [0, 96], sizes = [8, 32], strides = [1, 1]} : vector<8x128xf32> to vector<8x32xf32>
    %47 = arith.mulf %44, %45 : vector<8x32xf32>
    %48 = math.tanh %47 : vector<8x32xf32>
    %49 = arith.mulf %46, %48 : vector<8x32xf32>
    %cst_12 = arith.constant dense<0.000000e+00> : vector<8x128xf32>
    %50 = tpu.matmul %49, %24, %cst_12 {dimension_numbers = #tpu.dot_dimension_numbers<[1], [0], [0], [1], [0, 0, 1, 1], [], []>} : vector<8x32xf32>, vector<32x128xf32>, vector<8x128xf32> -> vector<8x128xf32>
    %51 = arith.addf %11, %50 : vector<8x128xf32>
    %52 = vector.broadcast %33 : vector<1x128xf32> to vector<8x128xf32>
    %53 = arith.mulf %51, %52 : vector<8x128xf32>
    %54 = math.tanh %53 : vector<8x128xf32>
    %55 = vector.broadcast %33 : vector<1x128xf32> to vector<8x128xf32>
    %56 = arith.mulf %54, %55 : vector<8x128xf32>
    %57 = vector.broadcast %36 : vector<1x128xf32> to vector<8x128xf32>
    %58 = arith.addf %56, %57 : vector<8x128xf32>
    %59 = vector.extract_strided_slice %58 {offsets = [0, 0], sizes = [8, 32], strides = [1, 1]} : vector<8x128xf32> to vector<8x32xf32>
    %60 = vector.extract_strided_slice %58 {offsets = [0, 32], sizes = [8, 32], strides = [1, 1]} : vector<8x128xf32> to vector<8x32xf32>
    %61 = vector.extract_strided_slice %58 {offsets = [0, 64], sizes = [8, 32], strides = [1, 1]} : vector<8x128xf32> to vector<8x32xf32>
    %62 = vector.extract_strided_slice %58 {offsets = [0, 96], sizes = [8, 32], strides = [1, 1]} : vector<8x128xf32> to vector<8x32xf32>
    %63 = arith.mulf %60, %47 : vector<8x32xf32>
    %64 = arith.mulf %59, %61 : vector<8x32xf32>
    %65 = arith.addf %63, %64 : vector<8x32xf32>
    %66 = math.tanh %65 : vector<8x32xf32>
    %67 = arith.mulf %62, %66 : vector<8x32xf32>
    %cst_13 = arith.constant dense<0.000000e+00> : vector<8x128xf32>
    %68 = tpu.matmul %67, %24, %cst_13 {dimension_numbers = #tpu.dot_dimension_numbers<[1], [0], [0], [1], [0, 0, 1, 1], [], []>} : vector<8x32xf32>, vector<32x128xf32>, vector<8x128xf32> -> vector<8x128xf32>
    %69 = arith.addf %13, %68 : vector<8x128xf32>
    %70 = vector.broadcast %33 : vector<1x128xf32> to vector<8x128xf32>
    %71 = arith.mulf %69, %70 : vector<8x128xf32>
    %72 = math.tanh %71 : vector<8x128xf32>
    %73 = vector.broadcast %33 : vector<1x128xf32> to vector<8x128xf32>
    %74 = arith.mulf %72, %73 : vector<8x128xf32>
    %75 = vector.broadcast %36 : vector<1x128xf32> to vector<8x128xf32>
    %76 = arith.addf %74, %75 : vector<8x128xf32>
    %77 = vector.extract_strided_slice %76 {offsets = [0, 0], sizes = [8, 32], strides = [1, 1]} : vector<8x128xf32> to vector<8x32xf32>
    %78 = vector.extract_strided_slice %76 {offsets = [0, 32], sizes = [8, 32], strides = [1, 1]} : vector<8x128xf32> to vector<8x32xf32>
    %79 = vector.extract_strided_slice %76 {offsets = [0, 64], sizes = [8, 32], strides = [1, 1]} : vector<8x128xf32> to vector<8x32xf32>
    %80 = vector.extract_strided_slice %76 {offsets = [0, 96], sizes = [8, 32], strides = [1, 1]} : vector<8x128xf32> to vector<8x32xf32>
    %81 = arith.mulf %78, %65 : vector<8x32xf32>
    %82 = arith.mulf %77, %79 : vector<8x32xf32>
    %83 = arith.addf %81, %82 : vector<8x32xf32>
    %84 = math.tanh %83 : vector<8x32xf32>
    %85 = arith.mulf %80, %84 : vector<8x32xf32>
    %cst_14 = arith.constant dense<0.000000e+00> : vector<8x128xf32>
    %86 = tpu.matmul %85, %24, %cst_14 {dimension_numbers = #tpu.dot_dimension_numbers<[1], [0], [0], [1], [0, 0, 1, 1], [], []>} : vector<8x32xf32>, vector<32x128xf32>, vector<8x128xf32> -> vector<8x128xf32>
    %87 = arith.addf %15, %86 : vector<8x128xf32>
    %88 = vector.broadcast %33 : vector<1x128xf32> to vector<8x128xf32>
    %89 = arith.mulf %87, %88 : vector<8x128xf32>
    %90 = math.tanh %89 : vector<8x128xf32>
    %91 = vector.broadcast %33 : vector<1x128xf32> to vector<8x128xf32>
    %92 = arith.mulf %90, %91 : vector<8x128xf32>
    %93 = vector.broadcast %36 : vector<1x128xf32> to vector<8x128xf32>
    %94 = arith.addf %92, %93 : vector<8x128xf32>
    %95 = vector.extract_strided_slice %94 {offsets = [0, 0], sizes = [8, 32], strides = [1, 1]} : vector<8x128xf32> to vector<8x32xf32>
    %96 = vector.extract_strided_slice %94 {offsets = [0, 32], sizes = [8, 32], strides = [1, 1]} : vector<8x128xf32> to vector<8x32xf32>
    %97 = vector.extract_strided_slice %94 {offsets = [0, 64], sizes = [8, 32], strides = [1, 1]} : vector<8x128xf32> to vector<8x32xf32>
    %98 = vector.extract_strided_slice %94 {offsets = [0, 96], sizes = [8, 32], strides = [1, 1]} : vector<8x128xf32> to vector<8x32xf32>
    %99 = arith.mulf %96, %83 : vector<8x32xf32>
    %100 = arith.mulf %95, %97 : vector<8x32xf32>
    %101 = arith.addf %99, %100 : vector<8x32xf32>
    %102 = math.tanh %101 : vector<8x32xf32>
    %103 = arith.mulf %98, %102 : vector<8x32xf32>
    %cst_15 = arith.constant dense<0.000000e+00> : vector<8x128xf32>
    %104 = tpu.matmul %103, %24, %cst_15 {dimension_numbers = #tpu.dot_dimension_numbers<[1], [0], [0], [1], [0, 0, 1, 1], [], []>} : vector<8x32xf32>, vector<32x128xf32>, vector<8x128xf32> -> vector<8x128xf32>
    %105 = arith.addf %17, %104 : vector<8x128xf32>
    %106 = vector.broadcast %33 : vector<1x128xf32> to vector<8x128xf32>
    %107 = arith.mulf %105, %106 : vector<8x128xf32>
    %108 = math.tanh %107 : vector<8x128xf32>
    %109 = vector.broadcast %33 : vector<1x128xf32> to vector<8x128xf32>
    %110 = arith.mulf %108, %109 : vector<8x128xf32>
    %111 = vector.broadcast %36 : vector<1x128xf32> to vector<8x128xf32>
    %112 = arith.addf %110, %111 : vector<8x128xf32>
    %113 = vector.extract_strided_slice %112 {offsets = [0, 0], sizes = [8, 32], strides = [1, 1]} : vector<8x128xf32> to vector<8x32xf32>
    %114 = vector.extract_strided_slice %112 {offsets = [0, 32], sizes = [8, 32], strides = [1, 1]} : vector<8x128xf32> to vector<8x32xf32>
    %115 = vector.extract_strided_slice %112 {offsets = [0, 64], sizes = [8, 32], strides = [1, 1]} : vector<8x128xf32> to vector<8x32xf32>
    %116 = vector.extract_strided_slice %112 {offsets = [0, 96], sizes = [8, 32], strides = [1, 1]} : vector<8x128xf32> to vector<8x32xf32>
    %117 = arith.mulf %114, %101 : vector<8x32xf32>
    %118 = arith.mulf %113, %115 : vector<8x32xf32>
    %119 = arith.addf %117, %118 : vector<8x32xf32>
    %120 = math.tanh %119 : vector<8x32xf32>
    %121 = arith.mulf %116, %120 : vector<8x32xf32>
    %cst_16 = arith.constant dense<0.000000e+00> : vector<8x128xf32>
    %122 = tpu.matmul %121, %24, %cst_16 {dimension_numbers = #tpu.dot_dimension_numbers<[1], [0], [0], [1], [0, 0, 1, 1], [], []>} : vector<8x32xf32>, vector<32x128xf32>, vector<8x128xf32> -> vector<8x128xf32>
    %123 = arith.addf %19, %122 : vector<8x128xf32>
    %124 = vector.broadcast %33 : vector<1x128xf32> to vector<8x128xf32>
    %125 = arith.mulf %123, %124 : vector<8x128xf32>
    %126 = math.tanh %125 : vector<8x128xf32>
    %127 = vector.broadcast %33 : vector<1x128xf32> to vector<8x128xf32>
    %128 = arith.mulf %126, %127 : vector<8x128xf32>
    %129 = vector.broadcast %36 : vector<1x128xf32> to vector<8x128xf32>
    %130 = arith.addf %128, %129 : vector<8x128xf32>
    %131 = vector.extract_strided_slice %130 {offsets = [0, 0], sizes = [8, 32], strides = [1, 1]} : vector<8x128xf32> to vector<8x32xf32>
    %132 = vector.extract_strided_slice %130 {offsets = [0, 32], sizes = [8, 32], strides = [1, 1]} : vector<8x128xf32> to vector<8x32xf32>
    %133 = vector.extract_strided_slice %130 {offsets = [0, 64], sizes = [8, 32], strides = [1, 1]} : vector<8x128xf32> to vector<8x32xf32>
    %134 = vector.extract_strided_slice %130 {offsets = [0, 96], sizes = [8, 32], strides = [1, 1]} : vector<8x128xf32> to vector<8x32xf32>
    %135 = arith.mulf %132, %119 : vector<8x32xf32>
    %136 = arith.mulf %131, %133 : vector<8x32xf32>
    %137 = arith.addf %135, %136 : vector<8x32xf32>
    %138 = math.tanh %137 : vector<8x32xf32>
    %139 = arith.mulf %134, %138 : vector<8x32xf32>
    %cst_17 = arith.constant dense<0.000000e+00> : vector<8x128xf32>
    %140 = tpu.matmul %139, %24, %cst_17 {dimension_numbers = #tpu.dot_dimension_numbers<[1], [0], [0], [1], [0, 0, 1, 1], [], []>} : vector<8x32xf32>, vector<32x128xf32>, vector<8x128xf32> -> vector<8x128xf32>
    %141 = arith.addf %21, %140 : vector<8x128xf32>
    %142 = vector.broadcast %33 : vector<1x128xf32> to vector<8x128xf32>
    %143 = arith.mulf %141, %142 : vector<8x128xf32>
    %144 = math.tanh %143 : vector<8x128xf32>
    %145 = vector.broadcast %33 : vector<1x128xf32> to vector<8x128xf32>
    %146 = arith.mulf %144, %145 : vector<8x128xf32>
    %147 = vector.broadcast %36 : vector<1x128xf32> to vector<8x128xf32>
    %148 = arith.addf %146, %147 : vector<8x128xf32>
    %149 = vector.extract_strided_slice %148 {offsets = [0, 0], sizes = [8, 32], strides = [1, 1]} : vector<8x128xf32> to vector<8x32xf32>
    %150 = vector.extract_strided_slice %148 {offsets = [0, 32], sizes = [8, 32], strides = [1, 1]} : vector<8x128xf32> to vector<8x32xf32>
    %151 = vector.extract_strided_slice %148 {offsets = [0, 64], sizes = [8, 32], strides = [1, 1]} : vector<8x128xf32> to vector<8x32xf32>
    %152 = vector.extract_strided_slice %148 {offsets = [0, 96], sizes = [8, 32], strides = [1, 1]} : vector<8x128xf32> to vector<8x32xf32>
    %153 = arith.mulf %150, %137 : vector<8x32xf32>
    %154 = arith.mulf %149, %151 : vector<8x32xf32>
    %155 = arith.addf %153, %154 : vector<8x32xf32>
    %156 = math.tanh %155 : vector<8x32xf32>
    %157 = arith.mulf %152, %156 : vector<8x32xf32>
    %cst_18 = arith.constant dense<0.000000e+00> : vector<8x128xf32>
    %158 = tpu.matmul %157, %24, %cst_18 {dimension_numbers = #tpu.dot_dimension_numbers<[1], [0], [0], [1], [0, 0, 1, 1], [], []>} : vector<8x32xf32>, vector<32x128xf32>, vector<8x128xf32> -> vector<8x128xf32>
    %159 = arith.addf %23, %158 : vector<8x128xf32>
    %160 = vector.broadcast %33 : vector<1x128xf32> to vector<8x128xf32>
    %161 = arith.mulf %159, %160 : vector<8x128xf32>
    %162 = math.tanh %161 : vector<8x128xf32>
    %163 = vector.broadcast %33 : vector<1x128xf32> to vector<8x128xf32>
    %164 = arith.mulf %162, %163 : vector<8x128xf32>
    %165 = vector.broadcast %36 : vector<1x128xf32> to vector<8x128xf32>
    %166 = arith.addf %164, %165 : vector<8x128xf32>
    %167 = vector.extract_strided_slice %166 {offsets = [0, 0], sizes = [8, 32], strides = [1, 1]} : vector<8x128xf32> to vector<8x32xf32>
    %168 = vector.extract_strided_slice %166 {offsets = [0, 32], sizes = [8, 32], strides = [1, 1]} : vector<8x128xf32> to vector<8x32xf32>
    %169 = vector.extract_strided_slice %166 {offsets = [0, 64], sizes = [8, 32], strides = [1, 1]} : vector<8x128xf32> to vector<8x32xf32>
    %170 = vector.extract_strided_slice %166 {offsets = [0, 96], sizes = [8, 32], strides = [1, 1]} : vector<8x128xf32> to vector<8x32xf32>
    %171 = arith.mulf %168, %155 : vector<8x32xf32>
    %172 = arith.mulf %167, %169 : vector<8x32xf32>
    %173 = arith.addf %171, %172 : vector<8x32xf32>
    %174 = math.tanh %173 : vector<8x32xf32>
    %175 = arith.mulf %170, %174 : vector<8x32xf32>
    %176 = arith.mulf %49, %175 : vector<8x32xf32>
    %cst_19 = arith.constant dense<0.000000e+00> : vector<8xf32>
    %177 = vector.multi_reduction <add>, %176, %cst_19 [1] : vector<8x32xf32> to vector<8xf32>
    %178 = vector.shape_cast %177 : vector<8xf32> to vector<8x1xf32>
    %179 = arith.mulf %67, %175 : vector<8x32xf32>
    %cst_20 = arith.constant dense<0.000000e+00> : vector<8xf32>
    %180 = vector.multi_reduction <add>, %179, %cst_20 [1] : vector<8x32xf32> to vector<8xf32>
    %181 = vector.shape_cast %180 : vector<8xf32> to vector<8x1xf32>
    %182 = arith.mulf %85, %175 : vector<8x32xf32>
    %cst_21 = arith.constant dense<0.000000e+00> : vector<8xf32>
    %183 = vector.multi_reduction <add>, %182, %cst_21 [1] : vector<8x32xf32> to vector<8xf32>
    %184 = vector.shape_cast %183 : vector<8xf32> to vector<8x1xf32>
    %185 = arith.mulf %103, %175 : vector<8x32xf32>
    %cst_22 = arith.constant dense<0.000000e+00> : vector<8xf32>
    %186 = vector.multi_reduction <add>, %185, %cst_22 [1] : vector<8x32xf32> to vector<8xf32>
    %187 = vector.shape_cast %186 : vector<8xf32> to vector<8x1xf32>
    %188 = arith.mulf %121, %175 : vector<8x32xf32>
    %cst_23 = arith.constant dense<0.000000e+00> : vector<8xf32>
    %189 = vector.multi_reduction <add>, %188, %cst_23 [1] : vector<8x32xf32> to vector<8xf32>
    %190 = vector.shape_cast %189 : vector<8xf32> to vector<8x1xf32>
    %191 = arith.mulf %139, %175 : vector<8x32xf32>
    %cst_24 = arith.constant dense<0.000000e+00> : vector<8xf32>
    %192 = vector.multi_reduction <add>, %191, %cst_24 [1] : vector<8x32xf32> to vector<8xf32>
    %193 = vector.shape_cast %192 : vector<8xf32> to vector<8x1xf32>
    %194 = arith.mulf %157, %175 : vector<8x32xf32>
    %cst_25 = arith.constant dense<0.000000e+00> : vector<8xf32>
    %195 = vector.multi_reduction <add>, %194, %cst_25 [1] : vector<8x32xf32> to vector<8xf32>
    %196 = vector.shape_cast %195 : vector<8xf32> to vector<8x1xf32>
    %197 = arith.mulf %175, %175 : vector<8x32xf32>
    %cst_26 = arith.constant dense<0.000000e+00> : vector<8xf32>
    %198 = vector.multi_reduction <add>, %197, %cst_26 [1] : vector<8x32xf32> to vector<8xf32>
    %199 = vector.shape_cast %198 : vector<8xf32> to vector<8x1xf32>
    %200 = arith.maximumf %178, %181 : vector<8x1xf32>
    %201 = arith.maximumf %200, %184 : vector<8x1xf32>
    %202 = arith.maximumf %201, %187 : vector<8x1xf32>
    %203 = arith.maximumf %202, %190 : vector<8x1xf32>
    %204 = arith.maximumf %203, %193 : vector<8x1xf32>
    %205 = arith.maximumf %204, %196 : vector<8x1xf32>
    %206 = arith.maximumf %205, %199 : vector<8x1xf32>
    %207 = arith.subf %178, %206 : vector<8x1xf32>
    %208 = math.exp %207 : vector<8x1xf32>
    %209 = arith.subf %181, %206 : vector<8x1xf32>
    %210 = math.exp %209 : vector<8x1xf32>
    %211 = arith.subf %184, %206 : vector<8x1xf32>
    %212 = math.exp %211 : vector<8x1xf32>
    %213 = arith.subf %187, %206 : vector<8x1xf32>
    %214 = math.exp %213 : vector<8x1xf32>
    %215 = arith.subf %190, %206 : vector<8x1xf32>
    %216 = math.exp %215 : vector<8x1xf32>
    %217 = arith.subf %193, %206 : vector<8x1xf32>
    %218 = math.exp %217 : vector<8x1xf32>
    %219 = arith.subf %196, %206 : vector<8x1xf32>
    %220 = math.exp %219 : vector<8x1xf32>
    %221 = arith.subf %199, %206 : vector<8x1xf32>
    %222 = math.exp %221 : vector<8x1xf32>
    %223 = arith.addf %208, %210 : vector<8x1xf32>
    %224 = arith.addf %223, %212 : vector<8x1xf32>
    %225 = arith.addf %224, %214 : vector<8x1xf32>
    %226 = arith.addf %225, %216 : vector<8x1xf32>
    %227 = arith.addf %226, %218 : vector<8x1xf32>
    %228 = arith.addf %227, %220 : vector<8x1xf32>
    %229 = arith.addf %228, %222 : vector<8x1xf32>
    %230 = tpu.reciprocal %229 {approx = true} : vector<8x1xf32> -> vector<8x1xf32>
    %231 = arith.mulf %229, %230 : vector<8x1xf32>
    %cst_27 = arith.constant 2.000000e+00 : f32
    %232 = vector.broadcast %cst_27 : f32 to vector<8x1xf32>
    %233 = arith.subf %232, %231 : vector<8x1xf32>
    %234 = arith.mulf %230, %233 : vector<8x1xf32>
    %235 = vector.broadcast %208 : vector<8x1xf32> to vector<8x32xf32>
    %236 = arith.mulf %235, %49 : vector<8x32xf32>
    %237 = vector.broadcast %210 : vector<8x1xf32> to vector<8x32xf32>
    %238 = arith.mulf %237, %67 : vector<8x32xf32>
    %239 = arith.addf %236, %238 : vector<8x32xf32>
    %240 = vector.broadcast %212 : vector<8x1xf32> to vector<8x32xf32>
    %241 = arith.mulf %240, %85 : vector<8x32xf32>
    %242 = arith.addf %239, %241 : vector<8x32xf32>
    %243 = vector.broadcast %214 : vector<8x1xf32> to vector<8x32xf32>
    %244 = arith.mulf %243, %103 : vector<8x32xf32>
    %245 = arith.addf %242, %244 : vector<8x32xf32>
    %246 = vector.broadcast %216 : vector<8x1xf32> to vector<8x32xf32>
    %247 = arith.mulf %246, %121 : vector<8x32xf32>
    %248 = arith.addf %245, %247 : vector<8x32xf32>
    %249 = vector.broadcast %218 : vector<8x1xf32> to vector<8x32xf32>
    %250 = arith.mulf %249, %139 : vector<8x32xf32>
    %251 = arith.addf %248, %250 : vector<8x32xf32>
    %252 = vector.broadcast %220 : vector<8x1xf32> to vector<8x32xf32>
    %253 = arith.mulf %252, %157 : vector<8x32xf32>
    %254 = arith.addf %251, %253 : vector<8x32xf32>
    %255 = vector.broadcast %222 : vector<8x1xf32> to vector<8x32xf32>
    %256 = arith.mulf %255, %175 : vector<8x32xf32>
    %257 = arith.addf %254, %256 : vector<8x32xf32>
    %258 = vector.broadcast %234 : vector<8x1xf32> to vector<8x32xf32>
    %259 = arith.mulf %257, %258 : vector<8x32xf32>
    %c0_28 = arith.constant 0 : index
    %c0_29 = arith.constant 0 : index
    %260 = vector.load %arg5[%c0_28, %c0_29] : memref<32x128xf32, #tpu.memory_space<vmem>>, vector<32x128xf32>
    %cst_30 = arith.constant dense<0.000000e+00> : vector<8x128xf32>
    %261 = tpu.matmul %259, %260, %cst_30 {dimension_numbers = #tpu.dot_dimension_numbers<[1], [0], [0], [1], [0, 0, 1, 1], [], []>} : vector<8x32xf32>, vector<32x128xf32>, vector<8x128xf32> -> vector<8x128xf32>
    %c0_31 = arith.constant 0 : index
    %c0_32 = arith.constant 0 : index
    %262 = vector.load %arg6[%c0_31, %c0_32] : memref<1x128xf32, #tpu.memory_space<vmem>>, vector<1x128xf32>
    %263 = vector.broadcast %262 : vector<1x128xf32> to vector<8x128xf32>
    %264 = arith.addf %261, %263 : vector<8x128xf32>
    %c0_33 = arith.constant 0 : index
    %c0_34 = arith.constant 0 : index
    %265 = vector.load %arg7[%c0_33, %c0_34] : memref<8x128xf32, #tpu.memory_space<vmem>>, vector<8x128xf32>
    tpu.vector_store %arg7[%c0_33, %c0_34], %264 {strides = array<i32>} : memref<8x128xf32, #tpu.memory_space<vmem>>, vector<8x128xf32>,
    return
  }
  func.func @transform_0(%arg0: i32) -> (i32, i32, i32) {
    %c0_i32 = arith.constant 0 : i32
    %c0_i32_0 = arith.constant 0 : i32
    %c0_i32_1 = arith.constant 0 : i32
    return %c0_i32, %arg0, %c0_i32_0 : i32, i32, i32
  }
  func.func @transform_1(%arg0: i32) -> (i32, i32) {
    %c0_i32 = arith.constant 0 : i32
    %c0_i32_0 = arith.constant 0 : i32
    %c0_i32_1 = arith.constant 0 : i32
    return %c0_i32, %c0_i32_0 : i32, i32
  }
  func.func @transform_2(%arg0: i32) -> (i32, i32) {
    %c0_i32 = arith.constant 0 : i32
    %c0_i32_0 = arith.constant 0 : i32
    %c0_i32_1 = arith.constant 0 : i32
    return %c0_i32, %c0_i32_0 : i32, i32
  }
  func.func @transform_3(%arg0: i32) -> (i32, i32) {
    %c0_i32 = arith.constant 0 : i32
    %c0_i32_0 = arith.constant 0 : i32
    %c0_i32_1 = arith.constant 0 : i32
    return %c0_i32, %c0_i32_0 : i32, i32
  }
  func.func @transform_4(%arg0: i32) -> (i32, i32) {
    %c0_i32 = arith.constant 0 : i32
    %c0_i32_0 = arith.constant 0 : i32
    %c0_i32_1 = arith.constant 0 : i32
    return %c0_i32, %c0_i32_0 : i32, i32
  }
  func.func @transform_5(%arg0: i32) -> (i32, i32) {
    %c0_i32 = arith.constant 0 : i32
    %c0_i32_0 = arith.constant 0 : i32
    %c0_i32_1 = arith.constant 0 : i32
    return %c0_i32, %c0_i32_0 : i32, i32
  }
  func.func @transform_6(%arg0: i32) -> (i32, i32) {
    %c0_i32 = arith.constant 0 : i32
    %c0_i32_0 = arith.constant 0 : i32
    return %arg0, %c0_i32 : i32, i32
  }
}

</mosaic_0001>

<llo_original>
// kernel: tpu_custom_call.1
$region0: #{tpu_custom_call.1}
  #allocation0 [shape = 'u32[]', space=smem, size = 0x4, offset = 0x4, fixed_abs, tag = 'smem constant byte address 0x4 - core index']
  #allocation1 [shape = 'u32[144,128]{1,0:T(1,128)}', space=vmem, size = 0x12000, scoped, tag = 'internal scratch']
  %s0 = inlined_call_operand.hbm [shape: f32[8,8,32], index: 0, kind: input, shape index: {}]
  %s1 = inlined_call_operand.hbm [shape: f32[32,128], index: 1, kind: input, shape index: {}]
  %s2 = inlined_call_operand.hbm [shape: f32[32,128], index: 2, kind: input, shape index: {}]
  %s3 = inlined_call_operand.vmem [shape: f32[1,128], index: 3, kind: input, shape index: {}]
  %s4 = inlined_call_operand.hbm [shape: f32[32,128], index: 4, kind: input, shape index: {}]
  %s5 = inlined_call_operand.vmem [shape: f32[1,128], index: 5, kind: input, shape index: {}]
  %s6 = inlined_call_operand.hbm [shape: f32[8,128], index: 6, kind: output, shape index: {}]
  %s7 = sld [smem:[#allocation0]]
  $region50: #{tpu_custom_call.1} parent=0
    _
  %s9 = ssub.s32 1, %s7
  %s10 = scalar_select 0, %s9, %s7
  $region1: #{tpu_custom_call.1} parent=0
    #allocation2 [shape = 'u8[32768]{0}', space=vmem, size = 0x8000, scoped, tag = 'input window, operand 0, single buffered']
    #allocation3 [shape = 's32[1]{0}', space=sflag, size = 0x4, scoped, tag = 'scoped memory for tpu_custom_call.1']
    #allocation4 [shape = 's32[1]{0}', space=sflag, size = 0x4, scoped, tag = 'scoped memory for tpu_custom_call.1']
    #allocation5 [shape = 'u8[16384]{0}', space=vmem, size = 0x4000, scoped, tag = 'input window, operand 1, single buffered']
    #allocation6 [shape = 's32[1]{0}', space=sflag, size = 0x4, scoped, tag = 'scoped memory for tpu_custom_call.1']
    #allocation7 [shape = 'u8[16384]{0}', space=vmem, size = 0x4000, scoped, tag = 'input window, operand 2, single buffered']
    #allocation8 [shape = 'u8[16384]{0}', space=vmem, size = 0x4000, scoped, tag = 'input window, operand 4, single buffered']
    #allocation9 [shape = 's32[1]{0}', space=sflag, size = 0x4, scoped, tag = 'scoped memory for tpu_custom_call.1']
    #allocation10 [shape = 'u8[4096]{0}', space=vmem, size = 0x1000, scoped, tag = 'output window, operand 0, single buffered']
    %11 = vsyncpa [#allocation3], 0
    %12 = vsyncpa [#allocation6], 0
    %13 = vsyncpa [#allocation9], 0
    %14 = vsyncpa [#allocation4], 0
    // Predicated region
    $region2: #{tpu_custom_call.1} parent=1 // pred_check
      _
    $region3: #{tpu_custom_call.1} parent=1 // pred_check_branch
      %16 = sbr.rel (0) target = $region5
    $region4: #{tpu_custom_call.1} parent=1 // pred_region
      %s18 = ssub.s32 1024, 1024
      %19 = vsyncadd [#allocation3], %s18
      %s20 = sshll.u32 [#allocation2], 4
      %s21 = int_to_ptr.vmem [resolvable:$true] %s20
      %26 = dma.hbm_to_vmem [thread:$0]  %s0, 1024, %s21, [#allocation3], 128, 128, 8
    $region5: #{tpu_custom_call.1} parent=1 // pred_fallthru
      _
    // Predicated region
    $region6: #{tpu_custom_call.1} parent=1 // pred_check
      _
    $region7: #{tpu_custom_call.1} parent=1 // pred_check_branch
      %28 = sbr.rel (0) target = $region9
    $region8: #{tpu_custom_call.1} parent=1 // pred_region
      %s30 = ssub.s32 512, 512
      %31 = vsyncadd [#allocation6], %s30
      %s32 = sshll.u32 [#allocation5], 4
      %s33 = int_to_ptr.vmem [resolvable:$true] %s32
      %38 = dma.hbm_to_vmem [thread:$0]  %s1, 512, %s33, [#allocation6], 128, 128, 8
    $region9: #{tpu_custom_call.1} parent=1 // pred_fallthru
      _
    // Predicated region
    $region10: #{tpu_custom_call.1} parent=1 // pred_check
      _
    $region11: #{tpu_custom_call.1} parent=1 // pred_check_branch
      %40 = sbr.rel (0) target = $region13
    $region12: #{tpu_custom_call.1} parent=1 // pred_region
      %s42 = ssub.s32 512, 512
      %43 = vsyncadd [#allocation6], %s42
      %s44 = sshll.u32 [#allocation7], 4
      %s45 = int_to_ptr.vmem [resolvable:$true] %s44
      %50 = dma.hbm_to_vmem [thread:$0]  %s2, 512, %s45, [#allocation6], 128, 128, 8
    $region13: #{tpu_custom_call.1} parent=1 // pred_fallthru
      _
    // Predicated region
    $region14: #{tpu_custom_call.1} parent=1 // pred_check
      _
    $region15: #{tpu_custom_call.1} parent=1 // pred_check_branch
      %52 = sbr.rel (0) target = $region17
    $region16: #{tpu_custom_call.1} parent=1 // pred_region
      _
    $region17: #{tpu_custom_call.1} parent=1 // pred_fallthru
      _
    // Predicated region
    $region18: #{tpu_custom_call.1} parent=1 // pred_check
      _
    $region19: #{tpu_custom_call.1} parent=1 // pred_check_branch
      %54 = sbr.rel (0) target = $region21
    $region20: #{tpu_custom_call.1} parent=1 // pred_region
      %s56 = ssub.s32 512, 512
      %57 = vsyncadd [#allocation9], %s56
      %s58 = sshll.u32 [#allocation8], 4
      %s59 = int_to_ptr.vmem [resolvable:$true] %s58
      %64 = dma.hbm_to_vmem [thread:$0]  %s4, 512, %s59, [#allocation9], 128, 128, 8
    $region21: #{tpu_custom_call.1} parent=1 // pred_fallthru
      _
    // Predicated region
    $region22: #{tpu_custom_call.1} parent=1 // pred_check
      _
    $region23: #{tpu_custom_call.1} parent=1 // pred_check_branch
      %66 = sbr.rel (0) target = $region25
    $region24: #{tpu_custom_call.1} parent=1 // pred_region
      _
    $region25: #{tpu_custom_call.1} parent=1 // pred_fallthru
      _
    // Predicated region
    $region26: #{tpu_custom_call.1} parent=1 // pred_check
      _
    $region27: #{tpu_custom_call.1} parent=1 // pred_check_branch
      %68 = sbr.rel (0) target = $region29
    $region28: #{tpu_custom_call.1} parent=1 // pred_region
      %69 = dma.done [#allocation3], 1024
    $region29: #{tpu_custom_call.1} parent=1 // pred_fallthru
      _
    // Predicated region
    $region30: #{tpu_custom_call.1} parent=1 // pred_check
      _
    $region31: #{tpu_custom_call.1} parent=1 // pred_check_branch
      %71 = sbr.rel (0) target = $region33
    $region32: #{tpu_custom_call.1} parent=1 // pred_region
      %72 = dma.done [#allocation6], 512
    $region33: #{tpu_custom_call.1} parent=1 // pred_fallthru
      _
    // Predicated region
    $region34: #{tpu_custom_call.1} parent=1 // pred_check
      _
    $region35: #{tpu_custom_call.1} parent=1 // pred_check_branch
      %74 = sbr.rel (0) target = $region37
    $region36: #{tpu_custom_call.1} parent=1 // pred_region
      %75 = dma.done [#allocation6], 512
    $region37: #{tpu_custom_call.1} parent=1 // pred_fallthru
      _
    // Predicated region
    $region38: #{tpu_custom_call.1} parent=1 // pred_check
      _
    $region39: #{tpu_custom_call.1} parent=1 // pred_check_branch
      %77 = sbr.rel (0) target = $region41
    $region40: #{tpu_custom_call.1} parent=1 // pred_region
      %78 = dma.done [#allocation9], 512
    $region41: #{tpu_custom_call.1} parent=1 // pred_fallthru
      _
    %v79 = vld [vmem:[#allocation2] sm:$0xff]
    %v80 = vld [vmem:[#allocation2 + $0x8] sm:$0xff]
    %v81 = vld [vmem:[#allocation2 + $0x10] sm:$0xff]
    %v82 = vld [vmem:[#allocation2 + $0x18] sm:$0xff]
    %v83 = vld [vmem:[#allocation2 + $0x20] sm:$0xff]
    %v84 = vld [vmem:[#allocation2 + $0x28] sm:$0xff]
    %v85 = vld [vmem:[#allocation2 + $0x30] sm:$0xff]
    %v86 = vld [vmem:[#allocation2 + $0x38] sm:$0xff]
    %v87 = vld [vmem:[#allocation5] sm:$0xff]
    %v88 = vld [vmem:[#allocation5 + $0x8] sm:$0xff]
    %v89 = vld [vmem:[#allocation5 + $0x10] sm:$0xff]
    %v90 = vld [vmem:[#allocation5 + $0x18] sm:$0xff]
    %v91 = vld [vmem:[%s3] sm:$0x1]
    %v93 = vlaneseq
    %v94 = vshrl.u32 %v93, 7
    %v95 = vsub.s32 0, %v94
    %v96 = vrot.slane %v91, %v95
    %vm98 = vcmask 261120
    %v100 = vsel %vm98, %v79, 0
    %v103 = vsel %vm98, %v80, 0
    %v106 = vsel %vm98, %v81, 0
    %v109 = vsel %vm98, %v82, 0
    %v112 = vsel %vm98, %v83, 0
    %v115 = vsel %vm98, %v84, 0
    %v118 = vsel %vm98, %v85, 0
    %v121 = vsel %vm98, %v86, 0
    %123 = vmatprep.subr.mxu0 0.0
    %124 = vmatpush1.msra.mxu0 %v87
    %125 = vmatprep.subr.mxu0 0.0
    %126 = vmatpush1.msra.mxu0 %v88
    %127 = vmatprep.subr.mxu0 0.0
    %128 = vmatpush1.msra.mxu0 %v89
    %129 = vmatprep.subr.mxu0 0.0
    %130 = vmatpush1.msra.mxu0 %v90
    %131 = vmatprep.subr.mxu0 0.0
    %132 = vmatpush1.msra.mxu0 0.0
    %133 = vmatprep.subr.mxu0 0.0
    %134 = vmatpush1.msra.mxu0 0.0
    %135 = vmatprep.subr.mxu0 0.0
    %136 = vmatpush1.msra.mxu0 0.0
    %137 = vmatprep.subr.mxu0 0.0
    %138 = vmatpush1.msra.mxu0 0.0
    %139 = vmatprep.subr.mxu0 0.0
    %140 = vmatpush1.msra.mxu0 0.0
    %141 = vmatprep.subr.mxu0 0.0
    %142 = vmatpush1.msra.mxu0 0.0
    %143 = vmatprep.subr.mxu0 0.0
    %144 = vmatpush1.msra.mxu0 0.0
    %145 = vmatprep.subr.mxu0 0.0
    %146 = vmatpush1.msra.mxu0 0.0
    %147 = vmatprep.subr.mxu0 0.0
    %148 = vmatpush1.msra.mxu0 0.0
    %149 = vmatprep.subr.mxu0 0.0
    %150 = vmatpush1.msra.mxu0 0.0
    %151 = vmatprep.subr.mxu0 0.0
    %152 = vmatpush1.msra.mxu0 0.0
    %153 = vmatprep.subr.mxu0 0.0
    %154 = vmatpush1.msra.mxu0 0.0
    %155 = vmatprep.subr.mxu0 0.0
    %156 = vmatpush1.msra.mxu0 0.0
    %157 = vmatprep.subr.mxu0 0.0
    %158 = vmatpush1.msra.mxu0 0.0
    %159 = vmatprep.subr.mxu0 0.0
    %160 = vmatpush1.msra.mxu0 0.0
    %161 = vmatprep.subr.mxu0 0.0
    %162 = vmatpush1.msra.mxu0 0.0
    %163 = vmatprep.subr.mxu0 0.0
    %164 = vmatpush1.msra.mxu0 0.0
    %165 = vmatprep.subr.mxu0 0.0
    %166 = vmatpush1.msra.mxu0 0.0
    %167 = vmatprep.subr.mxu0 0.0
    %168 = vmatpush1.msra.mxu0 0.0
    %169 = vmatprep.subr.mxu0 0.0
    %170 = vmatpush1.msra.mxu0 0.0
    %171 = vmatprep.subr.mxu0 0.0
    %172 = vmatpush1.msra.mxu0 0.0
    %173 = vmatprep.subr.mxu0 0.0
    %174 = vmatpush1.msra.mxu0 0.0
    %175 = vmatprep.subr.mxu0 0.0
    %176 = vmatpush1.msra.mxu0 0.0
    %177 = vmatprep.subr.mxu0 0.0
    %178 = vmatpush1.msra.mxu0 0.0
    %179 = vmatprep.subr.mxu0 0.0
    %180 = vmatpush1.msra.mxu0 0.0
    %181 = vmatprep.subr.mxu0 0.0
    %182 = vmatpush1.msra.mxu0 0.0
    %183 = vmatprep.subr.mxu0 0.0
    %184 = vmatpush1.msra.mxu0 0.0
    %185 = vmatprep.subr.mxu0 0.0
    %186 = vmatpush1.msra.mxu0 0.0
    %187 = vmatprep.mubr.f32.mxu0 0.0
    %188 = vmatmul.mubr.f32.gmra.mrb[0].mxu0 %v100
    %v189 = vpop.f32.mrb[0].mxu0
    %v190 = vadd.f32 %v96, %v189
    %v191 = vpop.f32.mrb[0].mxu0
    %192 = vmatprep.mubr.f32.mxu0 0.0
    %193 = vmatmul.mubr.f32.gmra.mrb[0].mxu0 %v103
    %v194 = vpop.f32.mrb[0].mxu0
    %v195 = vadd.f32 %v96, %v194
    %v196 = vpop.f32.mrb[0].mxu0
    %197 = vmatprep.mubr.f32.mxu0 0.0
    %198 = vmatmul.mubr.f32.gmra.mrb[0].mxu0 %v106
    %v199 = vpop.f32.mrb[0].mxu0
    %v200 = vadd.f32 %v96, %v199
    %v201 = vpop.f32.mrb[0].mxu0
    %202 = vmatprep.mubr.f32.mxu0 0.0
    %203 = vmatmul.mubr.f32.gmra.mrb[0].mxu0 %v109
    %v204 = vpop.f32.mrb[0].mxu0
    %v205 = vadd.f32 %v96, %v204
    %v206 = vpop.f32.mrb[0].mxu0
    %207 = vmatprep.mubr.f32.mxu0 0.0
    %208 = vmatmul.mubr.f32.gmra.mrb[0].mxu0 %v112
    %v209 = vpop.f32.mrb[0].mxu0
    %v210 = vadd.f32 %v96, %v209
    %v211 = vpop.f32.mrb[0].mxu0
    %212 = vmatprep.mubr.f32.mxu0 0.0
    %213 = vmatmul.mubr.f32.gmra.mrb[0].mxu0 %v115
    %v214 = vpop.f32.mrb[0].mxu0
    %v215 = vadd.f32 %v96, %v214
    %v216 = vpop.f32.mrb[0].mxu0
    %217 = vmatprep.mubr.f32.mxu0 0.0
    %218 = vmatmul.mubr.f32.gmra.mrb[0].mxu0 %v118
    %v219 = vpop.f32.mrb[0].mxu0
    %v220 = vadd.f32 %v96, %v219
    %v221 = vpop.f32.mrb[0].mxu0
    %222 = vmatprep.mubr.f32.mxu0 0.0
    %223 = vmatmul.mubr.f32.gmra.mrb[0].mxu0 %v121
    %v224 = vpop.f32.mrb[0].mxu0
    %v225 = vadd.f32 %v96, %v224
    %v226 = vpop.f32.mrb[0].mxu0
    %227 = vdwg.mxu0
    %v228 = vld [vmem:[#allocation7] sm:$0xff]
    %v229 = vld [vmem:[#allocation7 + $0x8] sm:$0xff]
    %v230 = vld [vmem:[#allocation7 + $0x10] sm:$0xff]
    %v231 = vld [vmem:[#allocation7 + $0x18] sm:$0xff]
    %v232 = vlaneseq
    %v233 = vand.u32 %v232, 127
    %vm234 = vcmp.ge.s32.totalorder %v233, 64
    %vm235 = vcmp.lt.s32.totalorder %v233, 96
    %vm236 = vmand %vm234, %vm235
    %v237 = vsel %vm236, 1.0, 0.5
    %v238 = vsel %vm236, 0.0, 0.5
    %v239 = vmul.f32 %v190, %v237
    %v240 = vtanh.pop %v239
    %v241 = vmul.f32 %v240, %v237
    %v242 = vadd.f32 %v241, %v238
    %244 = vrot.lane.b32.xlu0 %v242, 64
    %v245 = vpop.permute.xlu0 %244
    %v247 = vmul.f32 %v242, %v245
    %v248 = vtanh.pop %v247
    %250 = vrot.lane.b32.xlu0 %v248, 96
    %v251 = vpop.permute.xlu0 %250
    %v253 = vmul.f32 %v242, %v251
    %255 = vrot.lane.b32.xlu0 %v253, 32
    %v256 = vpop.permute.xlu0 %255
    %v257 = vsel %vm98, %v256, 0
    %259 = vmatprep.subr.mxu0 0.0
    %260 = vmatpush1.msra.mxu0 %v228
    %261 = vmatprep.subr.mxu0 0.0
    %262 = vmatpush1.msra.mxu0 %v229
    %263 = vmatprep.subr.mxu0 0.0
    %264 = vmatpush1.msra.mxu0 %v230
    %265 = vmatprep.subr.mxu0 0.0
    %266 = vmatpush1.msra.mxu0 %v231
    %267 = vmatprep.subr.mxu0 0.0
    %268 = vmatpush1.msra.mxu0 0.0
    %269 = vmatprep.subr.mxu0 0.0
    %270 = vmatpush1.msra.mxu0 0.0
    %271 = vmatprep.subr.mxu0 0.0
    %272 = vmatpush1.msra.mxu0 0.0
    %273 = vmatprep.subr.mxu0 0.0
    %274 = vmatpush1.msra.mxu0 0.0
    %275 = vmatprep.subr.mxu0 0.0
    %276 = vmatpush1.msra.mxu0 0.0
    %277 = vmatprep.subr.mxu0 0.0
    %278 = vmatpush1.msra.mxu0 0.0
    %279 = vmatprep.subr.mxu0 0.0
    %280 = vmatpush1.msra.mxu0 0.0
    %281 = vmatprep.subr.mxu0 0.0
    %282 = vmatpush1.msra.mxu0 0.0
    %283 = vmatprep.subr.mxu0 0.0
    %284 = vmatpush1.msra.mxu0 0.0
    %285 = vmatprep.subr.mxu0 0.0
    %286 = vmatpush1.msra.mxu0 0.0
    %287 = vmatprep.subr.mxu0 0.0
    %288 = vmatpush1.msra.mxu0 0.0
    %289 = vmatprep.subr.mxu0 0.0
    %290 = vmatpush1.msra.mxu0 0.0
    %291 = vmatprep.subr.mxu0 0.0
    %292 = vmatpush1.msra.mxu0 0.0
    %293 = vmatprep.subr.mxu0 0.0
    %294 = vmatpush1.msra.mxu0 0.0
    %295 = vmatprep.subr.mxu0 0.0
    %296 = vmatpush1.msra.mxu0 0.0
    %297 = vmatprep.subr.mxu0 0.0
    %298 = vmatpush1.msra.mxu0 0.0
    %299 = vmatprep.subr.mxu0 0.0
    %300 = vmatpush1.msra.mxu0 0.0
    %301 = vmatprep.subr.mxu0 0.0
    %302 = vmatpush1.msra.mxu0 0.0
    %303 = vmatprep.subr.mxu0 0.0
    %304 = vmatpush1.msra.mxu0 0.0
    %305 = vmatprep.subr.mxu0 0.0
    %306 = vmatpush1.msra.mxu0 0.0
    %307 = vmatprep.subr.mxu0 0.0
    %308 = vmatpush1.msra.mxu0 0.0
    %309 = vmatprep.subr.mxu0 0.0
    %310 = vmatpush1.msra.mxu0 0.0
    %311 = vmatprep.subr.mxu0 0.0
    %312 = vmatpush1.msra.mxu0 0.0
    %313 = vmatprep.subr.mxu0 0.0
    %314 = vmatpush1.msra.mxu0 0.0
    %315 = vmatprep.subr.mxu0 0.0
    %316 = vmatpush1.msra.mxu0 0.0
    %317 = vmatprep.subr.mxu0 0.0
    %318 = vmatpush1.msra.mxu0 0.0
    %319 = vmatprep.subr.mxu0 0.0
    %320 = vmatpush1.msra.mxu0 0.0
    %321 = vmatprep.subr.mxu0 0.0
    %322 = vmatpush1.msra.mxu0 0.0
    %323 = vmatprep.mubr.f32.mxu0 0.0
    %324 = vmatmul.mubr.f32.gmra.mrb[0].mxu0 %v257
    %v325 = vpop.f32.mrb[0].mxu0
    %v326 = vadd.f32 0.0, %v325
    %v327 = vpop.f32.mrb[0].mxu0
    %328 = vdwg.mxu0
    %v329 = vadd.f32 %v195, %v326
    %v330 = vmul.f32 %v329, %v237
    %v331 = vtanh.pop %v330
    %v332 = vmul.f32 %v331, %v237
    %v333 = vadd.f32 %v332, %v238
    %335 = vrot.lane.b32.xlu0 %v247, 32
    %v336 = vpop.permute.xlu0 %335
    %v338 = vmul.f32 %v333, %v336
    %340 = vrot.lane.b32.xlu0 %v333, 64
    %v341 = vpop.permute.xlu0 %340
    %v343 = vmul.f32 %v333, %v341
    %345 = vrot.lane.b32.xlu0 %v343, 32
    %v346 = vpop.permute.xlu0 %345
    %v348 = vadd.f32 %v338, %v346
    %v349 = vtanh.pop %v348
    %351 = vrot.lane.b32.xlu0 %v349, 64
    %v352 = vpop.permute.xlu0 %351
    %v354 = vmul.f32 %v333, %v352
    %356 = vrot.lane.b32.xlu0 %v354, 32
    %v357 = vpop.permute.xlu0 %356
    %v358 = vsel %vm98, %v357, 0
    %360 = vmatprep.subr.mxu0 0.0
    %361 = vmatpush1.msra.mxu0 %v228
    %362 = vmatprep.subr.mxu0 0.0
    %363 = vmatpush1.msra.mxu0 %v229
    %364 = vmatprep.subr.mxu0 0.0
    %365 = vmatpush1.msra.mxu0 %v230
    %366 = vmatprep.subr.mxu0 0.0
    %367 = vmatpush1.msra.mxu0 %v231
    %368 = vmatprep.subr.mxu0 0.0
    %369 = vmatpush1.msra.mxu0 0.0
    %370 = vmatprep.subr.mxu0 0.0
    %371 = vmatpush1.msra.mxu0 0.0
    %372 = vmatprep.subr.mxu0 0.0
    %373 = vmatpush1.msra.mxu0 0.0
    %374 = vmatprep.subr.mxu0 0.0
    %375 = vmatpush1.msra.mxu0 0.0
    %376 = vmatprep.subr.mxu0 0.0
    %377 = vmatpush1.msra.mxu0 0.0
    %378 = vmatprep.subr.mxu0 0.0
    %379 = vmatpush1.msra.mxu0 0.0
    %380 = vmatprep.subr.mxu0 0.0
    %381 = vmatpush1.msra.mxu0 0.0
    %382 = vmatprep.subr.mxu0 0.0
    %383 = vmatpush1.msra.mxu0 0.0
    %384 = vmatprep.subr.mxu0 0.0
    %385 = vmatpush1.msra.mxu0 0.0
    %386 = vmatprep.subr.mxu0 0.0
    %387 = vmatpush1.msra.mxu0 0.0
    %388 = vmatprep.subr.mxu0 0.0
    %389 = vmatpush1.msra.mxu0 0.0
    %390 = vmatprep.subr.mxu0 0.0
    %391 = vmatpush1.msra.mxu0 0.0
    %392 = vmatprep.subr.mxu0 0.0
    %393 = vmatpush1.msra.mxu0 0.0
    %394 = vmatprep.subr.mxu0 0.0
    %395 = vmatpush1.msra.mxu0 0.0
    %396 = vmatprep.subr.mxu0 0.0
    %397 = vmatpush1.msra.mxu0 0.0
    %398 = vmatprep.subr.mxu0 0.0
    %399 = vmatpush1.msra.mxu0 0.0
    %400 = vmatprep.subr.mxu0 0.0
    %401 = vmatpush1.msra.mxu0 0.0
    %402 = vmatprep.subr.mxu0 0.0
    %403 = vmatpush1.msra.mxu0 0.0
    %404 = vmatprep.subr.mxu0 0.0
    %405 = vmatpush1.msra.mxu0 0.0
    %406 = vmatprep.subr.mxu0 0.0
    %407 = vmatpush1.msra.mxu0 0.0
    %408 = vmatprep.subr.mxu0 0.0
    %409 = vmatpush1.msra.mxu0 0.0
    %410 = vmatprep.subr.mxu0 0.0
    %411 = vmatpush1.msra.mxu0 0.0
    %412 = vmatprep.subr.mxu0 0.0
    %413 = vmatpush1.msra.mxu0 0.0
    %414 = vmatprep.subr.mxu0 0.0
    %415 = vmatpush1.msra.mxu0 0.0
    %416 = vmatprep.subr.mxu0 0.0
    %417 = vmatpush1.msra.mxu0 0.0
    %418 = vmatprep.subr.mxu0 0.0
    %419 = vmatpush1.msra.mxu0 0.0
    %420 = vmatprep.subr.mxu0 0.0
    %421 = vmatpush1.msra.mxu0 0.0
    %422 = vmatprep.subr.mxu0 0.0
    %423 = vmatpush1.msra.mxu0 0.0
    %424 = vmatprep.mubr.f32.mxu0 0.0
    %425 = vmatmul.mubr.f32.gmra.mrb[0].mxu0 %v358
    %v426 = vpop.f32.mrb[0].mxu0
    %v427 = vadd.f32 0.0, %v426
    %v428 = vpop.f32.mrb[0].mxu0
    %429 = vdwg.mxu0
    %v430 = vadd.f32 %v200, %v427
    %v431 = vmul.f32 %v430, %v237
    %v432 = vtanh.pop %v431
    %v433 = vmul.f32 %v432, %v237
    %v434 = vadd.f32 %v433, %v238
    %v435 = vmul.f32 %v434, %v348
    %437 = vrot.lane.b32.xlu0 %v434, 64
    %v438 = vpop.permute.xlu0 %437
    %v440 = vmul.f32 %v434, %v438
    %442 = vrot.lane.b32.xlu0 %v440, 32
    %v443 = vpop.permute.xlu0 %442
    %v445 = vadd.f32 %v435, %v443
    %v446 = vtanh.pop %v445
    %448 = vrot.lane.b32.xlu0 %v446, 64
    %v449 = vpop.permute.xlu0 %448
    %v451 = vmul.f32 %v434, %v449
    %453 = vrot.lane.b32.xlu0 %v451, 32
    %v454 = vpop.permute.xlu0 %453
    %v455 = vsel %vm98, %v454, 0
    %457 = vmatprep.subr.mxu0 0.0
    %458 = vmatpush1.msra.mxu0 %v228
    %459 = vmatprep.subr.mxu0 0.0
    %460 = vmatpush1.msra.mxu0 %v229
    %461 = vmatprep.subr.mxu0 0.0
    %462 = vmatpush1.msra.mxu0 %v230
    %463 = vmatprep.subr.mxu0 0.0
    %464 = vmatpush1.msra.mxu0 %v231
    %465 = vmatprep.subr.mxu0 0.0
    %466 = vmatpush1.msra.mxu0 0.0
    %467 = vmatprep.subr.mxu0 0.0
    %468 = vmatpush1.msra.mxu0 0.0
    %469 = vmatprep.subr.mxu0 0.0
    %470 = vmatpush1.msra.mxu0 0.0
    %471 = vmatprep.subr.mxu0 0.0
    %472 = vmatpush1.msra.mxu0 0.0
    %473 = vmatprep.subr.mxu0 0.0
    %474 = vmatpush1.msra.mxu0 0.0
    %475 = vmatprep.subr.mxu0 0.0
    %476 = vmatpush1.msra.mxu0 0.0
    %477 = vmatprep.subr.mxu0 0.0
    %478 = vmatpush1.msra.mxu0 0.0
    %479 = vmatprep.subr.mxu0 0.0
    %480 = vmatpush1.msra.mxu0 0.0
    %481 = vmatprep.subr.mxu0 0.0
    %482 = vmatpush1.msra.mxu0 0.0
    %483 = vmatprep.subr.mxu0 0.0
    %484 = vmatpush1.msra.mxu0 0.0
    %485 = vmatprep.subr.mxu0 0.0
    %486 = vmatpush1.msra.mxu0 0.0
    %487 = vmatprep.subr.mxu0 0.0
    %488 = vmatpush1.msra.mxu0 0.0
    %489 = vmatprep.subr.mxu0 0.0
    %490 = vmatpush1.msra.mxu0 0.0
    %491 = vmatprep.subr.mxu0 0.0
    %492 = vmatpush1.msra.mxu0 0.0
    %493 = vmatprep.subr.mxu0 0.0
    %494 = vmatpush1.msra.mxu0 0.0
    %495 = vmatprep.subr.mxu0 0.0
    %496 = vmatpush1.msra.mxu0 0.0
    %497 = vmatprep.subr.mxu0 0.0
    %498 = vmatpush1.msra.mxu0 0.0
    %499 = vmatprep.subr.mxu0 0.0
    %500 = vmatpush1.msra.mxu0 0.0
    %501 = vmatprep.subr.mxu0 0.0
    %502 = vmatpush1.msra.mxu0 0.0
    %503 = vmatprep.subr.mxu0 0.0
    %504 = vmatpush1.msra.mxu0 0.0
    %505 = vmatprep.subr.mxu0 0.0
    %506 = vmatpush1.msra.mxu0 0.0
    %507 = vmatprep.subr.mxu0 0.0
    %508 = vmatpush1.msra.mxu0 0.0
    %509 = vmatprep.subr.mxu0 0.0
    %510 = vmatpush1.msra.mxu0 0.0
    %511 = vmatprep.subr.mxu0 0.0
    %512 = vmatpush1.msra.mxu0 0.0
    %513 = vmatprep.subr.mxu0 0.0
    %514 = vmatpush1.msra.mxu0 0.0
    %515 = vmatprep.subr.mxu0 0.0
    %516 = vmatpush1.msra.mxu0 0.0
    %517 = vmatprep.subr.mxu0 0.0
    %518 = vmatpush1.msra.mxu0 0.0
    %519 = vmatprep.subr.mxu0 0.0
    %520 = vmatpush1.msra.mxu0 0.0
    %521 = vmatprep.mubr.f32.mxu0 0.0
    %522 = vmatmul.mubr.f32.gmra.mrb[0].mxu0 %v455
    %v523 = vpop.f32.mrb[0].mxu0
    %v524 = vadd.f32 0.0, %v523
    %v525 = vpop.f32.mrb[0].mxu0
    %526 = vdwg.mxu0
    %v527 = vadd.f32 %v205, %v524
    %v528 = vmul.f32 %v527, %v237
    %v529 = vtanh.pop %v528
    %v530 = vmul.f32 %v529, %v237
    %v531 = vadd.f32 %v530, %v238
    %v532 = vmul.f32 %v531, %v445
    %534 = vrot.lane.b32.xlu0 %v531, 64
    %v535 = vpop.permute.xlu0 %534
    %v537 = vmul.f32 %v531, %v535
    %539 = vrot.lane.b32.xlu0 %v537, 32
    %v540 = vpop.permute.xlu0 %539
    %v542 = vadd.f32 %v532, %v540
    %v543 = vtanh.pop %v542
    %545 = vrot.lane.b32.xlu0 %v543, 64
    %v546 = vpop.permute.xlu0 %545
    %v548 = vmul.f32 %v531, %v546
    %550 = vrot.lane.b32.xlu0 %v548, 32
    %v551 = vpop.permute.xlu0 %550
    %v552 = vsel %vm98, %v551, 0
    %554 = vmatprep.subr.mxu0 0.0
    %555 = vmatpush1.msra.mxu0 %v228
    %556 = vmatprep.subr.mxu0 0.0
    %557 = vmatpush1.msra.mxu0 %v229
    %558 = vmatprep.subr.mxu0 0.0
    %559 = vmatpush1.msra.mxu0 %v230
    %560 = vmatprep.subr.mxu0 0.0
    %561 = vmatpush1.msra.mxu0 %v231
    %562 = vmatprep.subr.mxu0 0.0
    %563 = vmatpush1.msra.mxu0 0.0
    %564 = vmatprep.subr.mxu0 0.0
    %565 = vmatpush1.msra.mxu0 0.0
    %566 = vmatprep.subr.mxu0 0.0
    %567 = vmatpush1.msra.mxu0 0.0
    %568 = vmatprep.subr.mxu0 0.0
    %569 = vmatpush1.msra.mxu0 0.0
    %570 = vmatprep.subr.mxu0 0.0
    %571 = vmatpush1.msra.mxu0 0.0
    %572 = vmatprep.subr.mxu0 0.0
    %573 = vmatpush1.msra.mxu0 0.0
    %574 = vmatprep.subr.mxu0 0.0
    %575 = vmatpush1.msra.mxu0 0.0
    %576 = vmatprep.subr.mxu0 0.0
    %577 = vmatpush1.msra.mxu0 0.0
    %578 = vmatprep.subr.mxu0 0.0
    %579 = vmatpush1.msra.mxu0 0.0
    %580 = vmatprep.subr.mxu0 0.0
    %581 = vmatpush1.msra.mxu0 0.0
    %582 = vmatprep.subr.mxu0 0.0
    %583 = vmatpush1.msra.mxu0 0.0
    %584 = vmatprep.subr.mxu0 0.0
    %585 = vmatpush1.msra.mxu0 0.0
    %586 = vmatprep.subr.mxu0 0.0
    %587 = vmatpush1.msra.mxu0 0.0
    %588 = vmatprep.subr.mxu0 0.0
    %589 = vmatpush1.msra.mxu0 0.0
    %590 = vmatprep.subr.mxu0 0.0
    %591 = vmatpush1.msra.mxu0 0.0
    %592 = vmatprep.subr.mxu0 0.0
    %593 = vmatpush1.msra.mxu0 0.0
    %594 = vmatprep.subr.mxu0 0.0
    %595 = vmatpush1.msra.mxu0 0.0
    %596 = vmatprep.subr.mxu0 0.0
    %597 = vmatpush1.msra.mxu0 0.0
    %598 = vmatprep.subr.mxu0 0.0
    %599 = vmatpush1.msra.mxu0 0.0
    %600 = vmatprep.subr.mxu0 0.0
    %601 = vmatpush1.msra.mxu0 0.0
    %602 = vmatprep.subr.mxu0 0.0
    %603 = vmatpush1.msra.mxu0 0.0
    %604 = vmatprep.subr.mxu0 0.0
    %605 = vmatpush1.msra.mxu0 0.0
    %606 = vmatprep.subr.mxu0 0.0
    %607 = vmatpush1.msra.mxu0 0.0
    %608 = vmatprep.subr.mxu0 0.0
    %609 = vmatpush1.msra.mxu0 0.0
    %610 = vmatprep.subr.mxu0 0.0
    %611 = vmatpush1.msra.mxu0 0.0
    %612 = vmatprep.subr.mxu0 0.0
    %613 = vmatpush1.msra.mxu0 0.0
    %614 = vmatprep.subr.mxu0 0.0
    %615 = vmatpush1.msra.mxu0 0.0
    %616 = vmatprep.subr.mxu0 0.0
    %617 = vmatpush1.msra.mxu0 0.0
    %618 = vmatprep.mubr.f32.mxu0 0.0
    %619 = vmatmul.mubr.f32.gmra.mrb[0].mxu0 %v552
    %v620 = vpop.f32.mrb[0].mxu0
    %v621 = vadd.f32 0.0, %v620
    %v622 = vpop.f32.mrb[0].mxu0
    %623 = vdwg.mxu0
    %v624 = vadd.f32 %v210, %v621
    %v625 = vmul.f32 %v624, %v237
    %v626 = vtanh.pop %v625
    %v627 = vmul.f32 %v626, %v237
    %v628 = vadd.f32 %v627, %v238
    %v629 = vmul.f32 %v628, %v542
    %631 = vrot.lane.b32.xlu0 %v628, 64
    %v632 = vpop.permute.xlu0 %631
    %v634 = vmul.f32 %v628, %v632
    %636 = vrot.lane.b32.xlu0 %v634, 32
    %v637 = vpop.permute.xlu0 %636
    %v639 = vadd.f32 %v629, %v637
    %v640 = vtanh.pop %v639
    %642 = vrot.lane.b32.xlu0 %v640, 64
    %v643 = vpop.permute.xlu0 %642
    %v645 = vmul.f32 %v628, %v643
    %647 = vrot.lane.b32.xlu0 %v645, 32
    %v648 = vpop.permute.xlu0 %647
    %v649 = vsel %vm98, %v648, 0
    %651 = vmatprep.subr.mxu0 0.0
    %652 = vmatpush1.msra.mxu0 %v228
    %653 = vmatprep.subr.mxu0 0.0
    %654 = vmatpush1.msra.mxu0 %v229
    %655 = vmatprep.subr.mxu0 0.0
    %656 = vmatpush1.msra.mxu0 %v230
    %657 = vmatprep.subr.mxu0 0.0
    %658 = vmatpush1.msra.mxu0 %v231
    %659 = vmatprep.subr.mxu0 0.0
    %660 = vmatpush1.msra.mxu0 0.0
    %661 = vmatprep.subr.mxu0 0.0
    %662 = vmatpush1.msra.mxu0 0.0
    %663 = vmatprep.subr.mxu0 0.0
    %664 = vmatpush1.msra.mxu0 0.0
    %665 = vmatprep.subr.mxu0 0.0
    %666 = vmatpush1.msra.mxu0 0.0
    %667 = vmatprep.subr.mxu0 0.0
    %668 = vmatpush1.msra.mxu0 0.0
    %669 = vmatprep.subr.mxu0 0.0
    %670 = vmatpush1.msra.mxu0 0.0
    %671 = vmatprep.subr.mxu0 0.0
    %672 = vmatpush1.msra.mxu0 0.0
    %673 = vmatprep.subr.mxu0 0.0
    %674 = vmatpush1.msra.mxu0 0.0
    %675 = vmatprep.subr.mxu0 0.0
    %676 = vmatpush1.msra.mxu0 0.0
    %677 = vmatprep.subr.mxu0 0.0
    %678 = vmatpush1.msra.mxu0 0.0
    %679 = vmatprep.subr.mxu0 0.0
    %680 = vmatpush1.msra.mxu0 0.0
    %681 = vmatprep.subr.mxu0 0.0
    %682 = vmatpush1.msra.mxu0 0.0
    %683 = vmatprep.subr.mxu0 0.0
    %684 = vmatpush1.msra.mxu0 0.0
    %685 = vmatprep.subr.mxu0 0.0
    %686 = vmatpush1.msra.mxu0 0.0
    %687 = vmatprep.subr.mxu0 0.0
    %688 = vmatpush1.msra.mxu0 0.0
    %689 = vmatprep.subr.mxu0 0.0
    %690 = vmatpush1.msra.mxu0 0.0
    %691 = vmatprep.subr.mxu0 0.0
    %692 = vmatpush1.msra.mxu0 0.0
    %693 = vmatprep.subr.mxu0 0.0
    %694 = vmatpush1.msra.mxu0 0.0
    %695 = vmatprep.subr.mxu0 0.0
    %696 = vmatpush1.msra.mxu0 0.0
    %697 = vmatprep.subr.mxu0 0.0
    %698 = vmatpush1.msra.mxu0 0.0
    %699 = vmatprep.subr.mxu0 0.0
    %700 = vmatpush1.msra.mxu0 0.0
    %701 = vmatprep.subr.mxu0 0.0
    %702 = vmatpush1.msra.mxu0 0.0
    %703 = vmatprep.subr.mxu0 0.0
    %704 = vmatpush1.msra.mxu0 0.0
    %705 = vmatprep.subr.mxu0 0.0
    %706 = vmatpush1.msra.mxu0 0.0
    %707 = vmatprep.subr.mxu0 0.0
    %708 = vmatpush1.msra.mxu0 0.0
    %709 = vmatprep.subr.mxu0 0.0
    %710 = vmatpush1.msra.mxu0 0.0
    %711 = vmatprep.subr.mxu0 0.0
    %712 = vmatpush1.msra.mxu0 0.0
    %713 = vmatprep.subr.mxu0 0.0
    %714 = vmatpush1.msra.mxu0 0.0
    %715 = vmatprep.mubr.f32.mxu0 0.0
    %716 = vmatmul.mubr.f32.gmra.mrb[0].mxu0 %v649
    %v717 = vpop.f32.mrb[0].mxu0
    %v718 = vadd.f32 0.0, %v717
    %v719 = vpop.f32.mrb[0].mxu0
    %720 = vdwg.mxu0
    %v721 = vadd.f32 %v215, %v718
    %v722 = vmul.f32 %v721, %v237
    %v723 = vtanh.pop %v722
    %v724 = vmul.f32 %v723, %v237
    %v725 = vadd.f32 %v724, %v238
    %v726 = vmul.f32 %v725, %v639
    %728 = vrot.lane.b32.xlu0 %v725, 64
    %v729 = vpop.permute.xlu0 %728
    %v731 = vmul.f32 %v725, %v729
    %733 = vrot.lane.b32.xlu0 %v731, 32
    %v734 = vpop.permute.xlu0 %733
    %v736 = vadd.f32 %v726, %v734
    %v737 = vtanh.pop %v736
    %739 = vrot.lane.b32.xlu0 %v737, 64
    %v740 = vpop.permute.xlu0 %739
    %v742 = vmul.f32 %v725, %v740
    %744 = vrot.lane.b32.xlu0 %v742, 32
    %v745 = vpop.permute.xlu0 %744
    %v746 = vsel %vm98, %v745, 0
    %748 = vmatprep.subr.mxu0 0.0
    %749 = vmatpush1.msra.mxu0 %v228
    %750 = vmatprep.subr.mxu0 0.0
    %751 = vmatpush1.msra.mxu0 %v229
    %752 = vmatprep.subr.mxu0 0.0
    %753 = vmatpush1.msra.mxu0 %v230
    %754 = vmatprep.subr.mxu0 0.0
    %755 = vmatpush1.msra.mxu0 %v231
    %756 = vmatprep.subr.mxu0 0.0
    %757 = vmatpush1.msra.mxu0 0.0
    %758 = vmatprep.subr.mxu0 0.0
    %759 = vmatpush1.msra.mxu0 0.0
    %760 = vmatprep.subr.mxu0 0.0
    %761 = vmatpush1.msra.mxu0 0.0
    %762 = vmatprep.subr.mxu0 0.0
    %763 = vmatpush1.msra.mxu0 0.0
    %764 = vmatprep.subr.mxu0 0.0
    %765 = vmatpush1.msra.mxu0 0.0
    %766 = vmatprep.subr.mxu0 0.0
    %767 = vmatpush1.msra.mxu0 0.0
    %768 = vmatprep.subr.mxu0 0.0
    %769 = vmatpush1.msra.mxu0 0.0
    %770 = vmatprep.subr.mxu0 0.0
    %771 = vmatpush1.msra.mxu0 0.0
    %772 = vmatprep.subr.mxu0 0.0
    %773 = vmatpush1.msra.mxu0 0.0
    %774 = vmatprep.subr.mxu0 0.0
    %775 = vmatpush1.msra.mxu0 0.0
    %776 = vmatprep.subr.mxu0 0.0
    %777 = vmatpush1.msra.mxu0 0.0
    %778 = vmatprep.subr.mxu0 0.0
    %779 = vmatpush1.msra.mxu0 0.0
    %780 = vmatprep.subr.mxu0 0.0
    %781 = vmatpush1.msra.mxu0 0.0
    %782 = vmatprep.subr.mxu0 0.0
    %783 = vmatpush1.msra.mxu0 0.0
    %784 = vmatprep.subr.mxu0 0.0
    %785 = vmatpush1.msra.mxu0 0.0
    %786 = vmatprep.subr.mxu0 0.0
    %787 = vmatpush1.msra.mxu0 0.0
    %788 = vmatprep.subr.mxu0 0.0
    %789 = vmatpush1.msra.mxu0 0.0
    %790 = vmatprep.subr.mxu0 0.0
    %791 = vmatpush1.msra.mxu0 0.0
    %792 = vmatprep.subr.mxu0 0.0
    %793 = vmatpush1.msra.mxu0 0.0
    %794 = vmatprep.subr.mxu0 0.0
    %795 = vmatpush1.msra.mxu0 0.0
    %796 = vmatprep.subr.mxu0 0.0
    %797 = vmatpush1.msra.mxu0 0.0
    %798 = vmatprep.subr.mxu0 0.0
    %799 = vmatpush1.msra.mxu0 0.0
    %800 = vmatprep.subr.mxu0 0.0
    %801 = vmatpush1.msra.mxu0 0.0
    %802 = vmatprep.subr.mxu0 0.0
    %803 = vmatpush1.msra.mxu0 0.0
    %804 = vmatprep.subr.mxu0 0.0
    %805 = vmatpush1.msra.mxu0 0.0
    %806 = vmatprep.subr.mxu0 0.0
    %807 = vmatpush1.msra.mxu0 0.0
    %808 = vmatprep.subr.mxu0 0.0
    %809 = vmatpush1.msra.mxu0 0.0
    %810 = vmatprep.subr.mxu0 0.0
    %811 = vmatpush1.msra.mxu0 0.0
    %812 = vmatprep.mubr.f32.mxu0 0.0
    %813 = vmatmul.mubr.f32.gmra.mrb[0].mxu0 %v746
    %v814 = vpop.f32.mrb[0].mxu0
    %v815 = vadd.f32 0.0, %v814
    %v816 = vpop.f32.mrb[0].mxu0
    %817 = vdwg.mxu0
    %v818 = vadd.f32 %v220, %v815
    %v819 = vmul.f32 %v818, %v237
    %v820 = vtanh.pop %v819
    %v821 = vmul.f32 %v820, %v237
    %v822 = vadd.f32 %v821, %v238
    %v823 = vmul.f32 %v822, %v736
    %825 = vrot.lane.b32.xlu0 %v822, 64
    %v826 = vpop.permute.xlu0 %825
    %v828 = vmul.f32 %v822, %v826
    %830 = vrot.lane.b32.xlu0 %v828, 32
    %v831 = vpop.permute.xlu0 %830
    %v833 = vadd.f32 %v823, %v831
    %v834 = vtanh.pop %v833
    %836 = vrot.lane.b32.xlu0 %v834, 64
    %v837 = vpop.permute.xlu0 %836
    %v839 = vmul.f32 %v822, %v837
    %841 = vrot.lane.b32.xlu0 %v839, 32
    %v842 = vpop.permute.xlu0 %841
    %v843 = vsel %vm98, %v842, 0
    %845 = vmatprep.subr.mxu0 0.0
    %846 = vmatpush1.msra.mxu0 %v228
    %847 = vmatprep.subr.mxu0 0.0
    %848 = vmatpush1.msra.mxu0 %v229
    %849 = vmatprep.subr.mxu0 0.0
    %850 = vmatpush1.msra.mxu0 %v230
    %851 = vmatprep.subr.mxu0 0.0
    %852 = vmatpush1.msra.mxu0 %v231
    %853 = vmatprep.subr.mxu0 0.0
    %854 = vmatpush1.msra.mxu0 0.0
    %855 = vmatprep.subr.mxu0 0.0
    %856 = vmatpush1.msra.mxu0 0.0
    %857 = vmatprep.subr.mxu0 0.0
    %858 = vmatpush1.msra.mxu0 0.0
    %859 = vmatprep.subr.mxu0 0.0
    %860 = vmatpush1.msra.mxu0 0.0
    %861 = vmatprep.subr.mxu0 0.0
    %862 = vmatpush1.msra.mxu0 0.0
    %863 = vmatprep.subr.mxu0 0.0
    %864 = vmatpush1.msra.mxu0 0.0
    %865 = vmatprep.subr.mxu0 0.0
    %866 = vmatpush1.msra.mxu0 0.0
    %867 = vmatprep.subr.mxu0 0.0
    %868 = vmatpush1.msra.mxu0 0.0
    %869 = vmatprep.subr.mxu0 0.0
    %870 = vmatpush1.msra.mxu0 0.0
    %871 = vmatprep.subr.mxu0 0.0
    %872 = vmatpush1.msra.mxu0 0.0
    %873 = vmatprep.subr.mxu0 0.0
    %874 = vmatpush1.msra.mxu0 0.0
    %875 = vmatprep.subr.mxu0 0.0
    %876 = vmatpush1.msra.mxu0 0.0
    %877 = vmatprep.subr.mxu0 0.0
    %878 = vmatpush1.msra.mxu0 0.0
    %879 = vmatprep.subr.mxu0 0.0
    %880 = vmatpush1.msra.mxu0 0.0
    %881 = vmatprep.subr.mxu0 0.0
    %882 = vmatpush1.msra.mxu0 0.0
    %883 = vmatprep.subr.mxu0 0.0
    %884 = vmatpush1.msra.mxu0 0.0
    %885 = vmatprep.subr.mxu0 0.0
    %886 = vmatpush1.msra.mxu0 0.0
    %887 = vmatprep.subr.mxu0 0.0
    %888 = vmatpush1.msra.mxu0 0.0
    %889 = vmatprep.subr.mxu0 0.0
    %890 = vmatpush1.msra.mxu0 0.0
    %891 = vmatprep.subr.mxu0 0.0
    %892 = vmatpush1.msra.mxu0 0.0
    %893 = vmatprep.subr.mxu0 0.0
    %894 = vmatpush1.msra.mxu0 0.0
    %895 = vmatprep.subr.mxu0 0.0
    %896 = vmatpush1.msra.mxu0 0.0
    %897 = vmatprep.subr.mxu0 0.0
    %898 = vmatpush1.msra.mxu0 0.0
    %899 = vmatprep.subr.mxu0 0.0
    %900 = vmatpush1.msra.mxu0 0.0
    %901 = vmatprep.subr.mxu0 0.0
    %902 = vmatpush1.msra.mxu0 0.0
    %903 = vmatprep.subr.mxu0 0.0
    %904 = vmatpush1.msra.mxu0 0.0
    %905 = vmatprep.subr.mxu0 0.0
    %906 = vmatpush1.msra.mxu0 0.0
    %907 = vmatprep.subr.mxu0 0.0
    %908 = vmatpush1.msra.mxu0 0.0
    %909 = vmatprep.mubr.f32.mxu0 0.0
    %910 = vmatmul.mubr.f32.gmra.mrb[0].mxu0 %v843
    %v911 = vpop.f32.mrb[0].mxu0
    %v912 = vadd.f32 0.0, %v911
    %v913 = vpop.f32.mrb[0].mxu0
    %914 = vdwg.mxu0
    %v915 = vadd.f32 %v225, %v912
    %v916 = vmul.f32 %v915, %v237
    %v917 = vtanh.pop %v916
    %v918 = vmul.f32 %v917, %v237
    %v919 = vadd.f32 %v918, %v238
    %v920 = vmul.f32 %v919, %v833
    %922 = vrot.lane.b32.xlu0 %v919, 64
    %v923 = vpop.permute.xlu0 %922
    %v925 = vmul.f32 %v919, %v923
    %927 = vrot.lane.b32.xlu0 %v925, 32
    %v928 = vpop.permute.xlu0 %927
    %v930 = vadd.f32 %v920, %v928
    %v931 = vtanh.pop %v930
    %933 = vrot.lane.b32.xlu0 %v931, 64
    %v934 = vpop.permute.xlu0 %933
    %v936 = vmul.f32 %v919, %v934
    %v937 = vmul.f32 %v253, %v936
    %939 = vrot.lane.b32.xlu0 %v937, 32
    %v940 = vpop.permute.xlu0 %939
    %v942 = vsel %vm98, %v940, 0.0
    %943 = vadd.xlane.f32.xlu0 %v942
    %v944 = vpop.xlane.xlu0 %943
    %v945 = vmul.f32 %v354, %v936
    %947 = vrot.lane.b32.xlu0 %v945, 32
    %v948 = vpop.permute.xlu0 %947
    %v950 = vsel %vm98, %v948, 0.0
    %951 = vadd.xlane.f32.xlu0 %v950
    %v952 = vpop.xlane.xlu0 %951
    %v953 = vmul.f32 %v451, %v936
    %955 = vrot.lane.b32.xlu0 %v953, 32
    %v956 = vpop.permute.xlu0 %955
    %v958 = vsel %vm98, %v956, 0.0
    %959 = vadd.xlane.f32.xlu0 %v958
    %v960 = vpop.xlane.xlu0 %959
    %v961 = vmul.f32 %v548, %v936
    %963 = vrot.lane.b32.xlu0 %v961, 32
    %v964 = vpop.permute.xlu0 %963
    %v966 = vsel %vm98, %v964, 0.0
    %967 = vadd.xlane.f32.xlu0 %v966
    %v968 = vpop.xlane.xlu0 %967
    %v969 = vmul.f32 %v645, %v936
    %971 = vrot.lane.b32.xlu0 %v969, 32
    %v972 = vpop.permute.xlu0 %971
    %v974 = vsel %vm98, %v972, 0.0
    %975 = vadd.xlane.f32.xlu0 %v974
    %v976 = vpop.xlane.xlu0 %975
    %v977 = vmul.f32 %v742, %v936
    %979 = vrot.lane.b32.xlu0 %v977, 32
    %v980 = vpop.permute.xlu0 %979
    %v982 = vsel %vm98, %v980, 0.0
    %983 = vadd.xlane.f32.xlu0 %v982
    %v984 = vpop.xlane.xlu0 %983
    %v985 = vmul.f32 %v839, %v936
    %987 = vrot.lane.b32.xlu0 %v985, 32
    %v988 = vpop.permute.xlu0 %987
    %v990 = vsel %vm98, %v988, 0.0
    %991 = vadd.xlane.f32.xlu0 %v990
    %v992 = vpop.xlane.xlu0 %991
    %v993 = vmul.f32 %v936, %v936
    %995 = vrot.lane.b32.xlu0 %v993, 32
    %v996 = vpop.permute.xlu0 %995
    %v998 = vsel %vm98, %v996, 0.0
    %999 = vadd.xlane.f32.xlu0 %v998
    %v1000 = vpop.xlane.xlu0 %999
    %v1001 = vmax.f32 %v944, %v952
    %v1002 = vmax.f32 %v1001, %v960
    %v1003 = vmax.f32 %v1002, %v968
    %v1004 = vmax.f32 %v1003, %v976
    %v1005 = vmax.f32 %v1004, %v984
    %v1006 = vmax.f32 %v1005, %v992
    %v1007 = vmax.f32 %v1006, %v1000
    %v1008 = vsub.f32 %v944, %v1007
    %v1009 = vmul.f32 %v1008, 1.442695
    %v1010 = vpow.pop %v1009
    %v1011 = vsub.f32 %v952, %v1007
    %v1012 = vmul.f32 %v1011, 1.442695
    %v1013 = vpow.pop %v1012
    %v1014 = vsub.f32 %v960, %v1007
    %v1015 = vmul.f32 %v1014, 1.442695
    %v1016 = vpow.pop %v1015
    %v1017 = vsub.f32 %v968, %v1007
    %v1018 = vmul.f32 %v1017, 1.442695
    %v1019 = vpow.pop %v1018
    %v1020 = vsub.f32 %v976, %v1007
    %v1021 = vmul.f32 %v1020, 1.442695
    %v1022 = vpow.pop %v1021
    %v1023 = vsub.f32 %v984, %v1007
    %v1024 = vmul.f32 %v1023, 1.442695
    %v1025 = vpow.pop %v1024
    %v1026 = vsub.f32 %v992, %v1007
    %v1027 = vmul.f32 %v1026, 1.442695
    %v1028 = vpow.pop %v1027
    %v1029 = vsub.f32 %v1000, %v1007
    %v1030 = vmul.f32 %v1029, 1.442695
    %v1031 = vpow.pop %v1030
    %v1032 = vadd.f32 %v1010, %v1013
    %v1033 = vadd.f32 %v1032, %v1016
    %v1034 = vadd.f32 %v1033, %v1019
    %v1035 = vadd.f32 %v1034, %v1022
    %v1036 = vadd.f32 %v1035, %v1025
    %v1037 = vadd.f32 %v1036, %v1028
    %v1038 = vadd.f32 %v1037, %v1031
    %v1039 = vrcp.pop %v1038
    %v1040 = vmul.f32 %v1038, %v1039
    %v1041 = vsub.f32 2.0, %v1040
    %v1042 = vmul.f32 %v1039, %v1041
    %v1043 = vmul.f32 %v1010, %v253
    %v1044 = vmul.f32 %v1013, %v354
    %v1045 = vadd.f32 %v1043, %v1044
    %v1046 = vmul.f32 %v1016, %v451
    %v1047 = vadd.f32 %v1045, %v1046
    %v1048 = vmul.f32 %v1019, %v548
    %v1049 = vadd.f32 %v1047, %v1048
    %v1050 = vmul.f32 %v1022, %v645
    %v1051 = vadd.f32 %v1049, %v1050
    %v1052 = vmul.f32 %v1025, %v742
    %v1053 = vadd.f32 %v1051, %v1052
    %v1054 = vmul.f32 %v1028, %v839
    %v1055 = vadd.f32 %v1053, %v1054
    %v1056 = vmul.f32 %v1031, %v936
    %v1057 = vadd.f32 %v1055, %v1056
    %v1058 = vmul.f32 %v1057, %v1042
    %v1059 = vld [vmem:[#allocation8] sm:$0xff]
    %v1060 = vld [vmem:[#allocation8 + $0x8] sm:$0xff]
    %v1061 = vld [vmem:[#allocation8 + $0x10] sm:$0xff]
    %v1062 = vld [vmem:[#allocation8 + $0x18] sm:$0xff]
    %v1063 = vld [vmem:[%s5] sm:$0x1]
    %v1065 = vlaneseq
    %v1066 = vshrl.u32 %v1065, 7
    %v1067 = vsub.s32 0, %v1066
    %v1068 = vrot.slane %v1063, %v1067
    %1071 = vrot.lane.b32.xlu0 %v1058, 32
    %v1072 = vpop.permute.xlu0 %1071
    %v1073 = vsel %vm98, %v1072, 0
    %1075 = vmatprep.subr.mxu0 0.0
    %1076 = vmatpush1.msra.mxu0 %v1059
    %1077 = vmatprep.subr.mxu0 0.0
    %1078 = vmatpush1.msra.mxu0 %v1060
    %1079 = vmatprep.subr.mxu0 0.0
    %1080 = vmatpush1.msra.mxu0 %v1061
    %1081 = vmatprep.subr.mxu0 0.0
    %1082 = vmatpush1.msra.mxu0 %v1062
    %1083 = vmatprep.subr.mxu0 0.0
    %1084 = vmatpush1.msra.mxu0 0.0
    %1085 = vmatprep.subr.mxu0 0.0
    %1086 = vmatpush1.msra.mxu0 0.0
    %1087 = vmatprep.subr.mxu0 0.0
    %1088 = vmatpush1.msra.mxu0 0.0
    %1089 = vmatprep.subr.mxu0 0.0
    %1090 = vmatpush1.msra.mxu0 0.0
    %1091 = vmatprep.subr.mxu0 0.0
    %1092 = vmatpush1.msra.mxu0 0.0
    %1093 = vmatprep.subr.mxu0 0.0
    %1094 = vmatpush1.msra.mxu0 0.0
    %1095 = vmatprep.subr.mxu0 0.0
    %1096 = vmatpush1.msra.mxu0 0.0
    %1097 = vmatprep.subr.mxu0 0.0
    %1098 = vmatpush1.msra.mxu0 0.0
    %1099 = vmatprep.subr.mxu0 0.0
    %1100 = vmatpush1.msra.mxu0 0.0
    %1101 = vmatprep.subr.mxu0 0.0
    %1102 = vmatpush1.msra.mxu0 0.0
    %1103 = vmatprep.subr.mxu0 0.0
    %1104 = vmatpush1.msra.mxu0 0.0
    %1105 = vmatprep.subr.mxu0 0.0
    %1106 = vmatpush1.msra.mxu0 0.0
    %1107 = vmatprep.subr.mxu0 0.0
    %1108 = vmatpush1.msra.mxu0 0.0
    %1109 = vmatprep.subr.mxu0 0.0
    %1110 = vmatpush1.msra.mxu0 0.0
    %1111 = vmatprep.subr.mxu0 0.0
    %1112 = vmatpush1.msra.mxu0 0.0
    %1113 = vmatprep.subr.mxu0 0.0
    %1114 = vmatpush1.msra.mxu0 0.0
    %1115 = vmatprep.subr.mxu0 0.0
    %1116 = vmatpush1.msra.mxu0 0.0
    %1117 = vmatprep.subr.mxu0 0.0
    %1118 = vmatpush1.msra.mxu0 0.0
    %1119 = vmatprep.subr.mxu0 0.0
    %1120 = vmatpush1.msra.mxu0 0.0
    %1121 = vmatprep.subr.mxu0 0.0
    %1122 = vmatpush1.msra.mxu0 0.0
    %1123 = vmatprep.subr.mxu0 0.0
    %1124 = vmatpush1.msra.mxu0 0.0
    %1125 = vmatprep.subr.mxu0 0.0
    %1126 = vmatpush1.msra.mxu0 0.0
    %1127 = vmatprep.subr.mxu0 0.0
    %1128 = vmatpush1.msra.mxu0 0.0
    %1129 = vmatprep.subr.mxu0 0.0
    %1130 = vmatpush1.msra.mxu0 0.0
    %1131 = vmatprep.subr.mxu0 0.0
    %1132 = vmatpush1.msra.mxu0 0.0
    %1133 = vmatprep.subr.mxu0 0.0
    %1134 = vmatpush1.msra.mxu0 0.0
    %1135 = vmatprep.subr.mxu0 0.0
    %1136 = vmatpush1.msra.mxu0 0.0
    %1137 = vmatprep.subr.mxu0 0.0
    %1138 = vmatpush1.msra.mxu0 0.0
    %1139 = vmatprep.mubr.f32.mxu0 0.0
    %1140 = vmatmul.mubr.f32.gmra.mrb[0].mxu0 %v1073
    %v1141 = vpop.f32.mrb[0].mxu0
    %v1142 = vadd.f32 %v1068, %v1141
    %v1143 = vpop.f32.mrb[0].mxu0
    %1144 = vdwg.mxu0
    %1145 = vst [vmem:[#allocation10] sm:$0xff] %v1142
    // Predicated region
    $region42: #{tpu_custom_call.1} parent=1 // pred_check
      _
    $region43: #{tpu_custom_call.1} parent=1 // pred_check_branch
      %1147 = sbr.rel (0) target = $region45
    $region44: #{tpu_custom_call.1} parent=1 // pred_region
      %s1149 = ssub.s32 128, 128
      %1150 = vsyncadd [#allocation4], %s1149
      %s1152 = sshll.u32 [#allocation10], 4
      %s1153 = int_to_ptr.vmem [resolvable:$true] %s1152
      %1155 = dma.vmem_to_hbm [thread:$0]  %s1153, 128, %s6, [#allocation4]
    $region45: #{tpu_custom_call.1} parent=1 // pred_fallthru
      _
    // Predicated region
    $region46: #{tpu_custom_call.1} parent=1 // pred_check
      _
    $region47: #{tpu_custom_call.1} parent=1 // pred_check_branch
      %1157 = sbr.rel (0) target = $region49
    $region48: #{tpu_custom_call.1} parent=1 // pred_region
      %1158 = dma.done [#allocation4], 128
    $region49: #{tpu_custom_call.1} parent=1 // pred_fallthru
      _
    %1159 = vsyncpa [#allocation3], 1
    %1160 = vsyncpa [#allocation6], 1
    %1161 = vsyncpa [#allocation9], 1
    %1162 = vsyncpa [#allocation4], 1

</llo_original>
